<compile_context>
chip_gen: v7x
topology: tpu7x:2x2x1
jax: 0.10.0
libtpu: 0.0.40
codegen_flags: <defaults>
</compile_context>

<pallas_src>
import functools

import jax
import jax.numpy as jnp
from jax import lax
from jax.experimental import pallas as pl
from jax.experimental.pallas import tpu as pltpu

IMSIZE = 64
NUM_ARGS = 11          # 8 shape args + 3 rgb
MIN_SHARPNESS = 1.0
MAX_SHARPNESS = 20.0
EPS = 1e-8
LANES = 128

# kernel-arg columns (after preprocessing / hoisting):
#  0 sharpness, 1 pos_x, 2 pos_y, 3 1/radius_x, 4 1/radius_y,
#  5 cos(angle), 6 sin(angle), 7 squareness, 8 r, 9 g, 10 b


# ----------------------------------------------------------------------------
# Pallas kernel: render N squircles for a tile of batch elements and composite.
# ----------------------------------------------------------------------------
def _render_kernel(args_ref, out_ref, *, num_shapes, batch_tile, imsize):
    # args_ref : SMEM (Bt, N, 11)          -- per-shape scalar arguments
    # out_ref  : VMEM (Bt, 4, ROWS, 128)   -- lane-dense composited RGBA output
    rows, lanes = out_ref.shape[-2], out_ref.shape[-1]
    shift = imsize.bit_length() - 1        # imsize is a power of two
    mask = imsize - 1

    # Build the (flattened, lane-dense) coordinate ramps in-kernel: flat index
    # -> (row, col) in the original (H, W) plane, scaled to [0, 1].
    lin = (lax.broadcasted_iota(jnp.int32, (rows, lanes), 0) * lanes
           + lax.broadcasted_iota(jnp.int32, (rows, lanes), 1))
    row_idx = lin >> shift
    col_idx = lin & mask
    inv_step = jnp.float32(1.0 / (imsize - 1))
    xr = row_idx.astype(jnp.float32) * inv_step   # varies along image rows
    yr = col_idx.astype(jnp.float32) * inv_step   # varies along image cols

    # Bt and N are small & static -> unrolled Python loops; scalars from SMEM.
    for b in range(batch_tile):
        acc_r = jnp.zeros((rows, lanes), jnp.float32)
        acc_g = jnp.zeros((rows, lanes), jnp.float32)
        acc_b = jnp.zeros((rows, lanes), jnp.float32)
        acc_a = jnp.zeros((rows, lanes), jnp.float32)

        for n in range(num_shapes):
            sharp  = args_ref[b, n, 0]
            pos_x  = args_ref[b, n, 1]
            pos_y  = args_ref[b, n, 2]
            inv_rx = args_ref[b, n, 3]
            inv_ry = args_ref[b, n, 4]
            ca     = args_ref[b, n, 5]
            sa     = args_ref[b, n, 6]
            sq     = args_ref[b, n, 7]
            col_r  = args_ref[b, n, 8]
            col_g  = args_ref[b, n, 9]
            col_b  = args_ref[b, n, 10]

            # --- squircle field over the flattened [ROWS, 128] grid ---
            tx = xr - pos_x
            ty = yr - pos_y
            rx = tx * ca - ty * sa
            ry = tx * sa + ty * ca
            sx = rx * inv_rx
            sy = ry * inv_ry
            x_s = sx * sx
            y_s = sy * sy
            p_half = 0.5 * (x_s + y_s)          # == -p/2 with p = -(x_s + y_s)
            q = x_s * y_s * sq
            squircle = jnp.sqrt(
                p_half + jnp.sqrt(p_half * p_half - q + EPS) + EPS)
            z = sharp * (1.0 - squircle)
            # sigmoid(z) == 0.5 * tanh(0.5 * z) + 0.5 (single EUP tanh)
            alpha = 0.5 * jnp.tanh(0.5 * z) + 0.5

            # --- alpha "over" compositing into vreg-resident accumulators ---
            one_m = 1.0 - alpha
            acc_r = col_r * alpha + acc_r * one_m
            acc_g = col_g * alpha + acc_g * one_m
            acc_b = col_b * alpha + acc_b * one_m
            acc_a = alpha + acc_a * one_m

        # single store of each output plane
        out_ref[b, 0] = acc_r
        out_ref[b, 1] = acc_g
        out_ref[b, 2] = acc_b
        out_ref[b, 3] = acc_a


def render_pallas(proc_args):
    """proc_args: [B, N, 11] processed args -> [B, 4, H, W] composited image."""
    B, N, _ = proc_args.shape
    H = W = IMSIZE
    assert (H * W) % LANES == 0 and (W & (W - 1)) == 0, "IMSIZE must be pow2"
    rows = (H * W) // LANES

    kargs = _prepare_kernel_args(proc_args)      # [B, N, 11]
    ak = kargs.shape[-1]

    # Process several batch elements per grid step to amortize per-step cost.
    bt = max(d for d in range(1, min(B, 8) + 1) if B % d == 0)

    kernel = functools.partial(
        _render_kernel, num_shapes=N, batch_tile=bt, imsize=IMSIZE)

    out_flat = pl.pallas_call(
        kernel,
        out_shape=jax.ShapeDtypeStruct((B, 4, rows, LANES), jnp.float32),
        grid=(B // bt,),
        in_specs=[
            pl.BlockSpec((bt, N, ak), lambda g: (g, 0, 0),
                         memory_space=pltpu.MemorySpace.SMEM),
        ],
        out_specs=pl.BlockSpec((bt, 4, rows, LANES), lambda g: (g, 0, 0, 0)),
        compiler_params=pltpu.CompilerParams(
            dimension_semantics=("parallel",)),
    )(kargs)
    return out_flat.reshape(B, 4, H, W)


# ----------------------------------------------------------------------------
# Plain-JAX glue: process_shape_arguments (matches PyTorch semantics) and
# hoisting of per-shape scalar trig / reciprocals out of the kernel.
# ----------------------------------------------------------------------------
def _unnormalize_to(x, lo, hi):
    return x * (hi - lo) + lo


def process_shape_arguments(x, imsize=IMSIZE, training=True):
    # TODO(synk): torchsort's l2-regularized soft_sort_by_column has no clean
    # JAX/Pallas equivalent; approximated with a hard sort of shapes by pos_z.
    order = jnp.argsort(x[..., 1], axis=-1)
    x = jnp.take_along_axis(x, order[..., None], axis=-2)

    new = x
    new = new.at[..., -3:].set(_unnormalize_to(x[..., -3:], -1.5, 1.5))
    new = new.at[..., 6].set(jnp.pi * x[..., 6])
    half_of_1px = 1.0 / imsize / 2.0
    # NOTE: the half-pixel offset is applied to columns 3:5 (pos_y, radius_x),
    # matching the PyTorch source verbatim.
    new = new.at[..., 3:5].set(x[..., 3:5] + half_of_1px)
    new = new.at[..., 0].set(
        _unnormalize_to(x[..., 0], MIN_SHARPNESS, MAX_SHARPNESS))
    if training:
        new = new.at[..., 7].set(_unnormalize_to(x[..., 7], 0.1, 0.9))
    else:
        new = new.at[..., 7].set(jnp.round(x[..., 7]))
    return new


def _prepare_kernel_args(proc):
    """[B, N, 11] processed args -> [B, N, 11] kernel args with scalar trig
    and radius reciprocals precomputed (keeps divides/trig off the EUP path)."""
    sharp = proc[..., 0]
    pos_x = proc[..., 2]
    pos_y = proc[..., 3]
    inv_rx = 1.0 / proc[..., 4]
    inv_ry = 1.0 / proc[..., 5]
    ca = jnp.cos(proc[..., 6])
    sa = jnp.sin(proc[..., 6])
    sq = proc[..., 7]
    return jnp.stack(
        [sharp, pos_x, pos_y, inv_rx, inv_ry, ca, sa, sq,
         proc[..., 8], proc[..., 9], proc[..., 10]], axis=-1
    ).astype(jnp.float32)


def shape_renderer_forward(shape_arguments):
    proc = process_shape_arguments(shape_arguments)
    # TODO(synk): alpha_composite_multiple is external; implemented inside the
    # kernel as standard back-to-front "over" compositing on a transparent bg.
    return render_pallas(proc)


# ----------------------------------------------------------------------------
# Pure-JAX reference (same math) for a correctness check.
# ----------------------------------------------------------------------------
def _render_ref(proc_args, x_ramp, y_ramp):
    B, N, _ = proc_args.shape
    H, W = x_ramp.shape
    a = proc_args
    sharp = a[..., 0][..., None, None]
    pos_x = a[..., 2][..., None, None]
    pos_y = a[..., 3][..., None, None]
    rad_x = a[..., 4][..., None, None]
    rad_y = a[..., 5][..., None, None]
    angle = a[..., 6][..., None, None]
    sq = a[..., 7][..., None, None]
    tx = x_ramp[None, None] - pos_x
    ty = y_ramp[None, None] - pos_y
    rx = tx * jnp.cos(angle) - ty * jnp.sin(angle)
    ry = tx * jnp.sin(angle) + ty * jnp.cos(angle)
    x_s = (rx / rad_x) ** 2
    y_s = (ry / rad_y) ** 2
    p = -(x_s + y_s)
    q = x_s * y_s * sq
    squircle = jnp.sqrt(-p / 2 + jnp.sqrt((p / 2) ** 2 - q + EPS) + EPS)
    alpha = jax.nn.sigmoid(sharp * (1.0 - squircle))       # [B, N, H, W]
    rgb = a[..., 8:11]                                      # [B, N, 3]
    out = jnp.zeros((B, 4, H, W), jnp.float32)
    for n in range(N):
        al = alpha[:, n][:, None]                           # [B, 1, H, W]
        layer_rgb = rgb[:, n, :, None, None] * jnp.ones((B, 3, H, W))
        out_rgb = layer_rgb * al + out[:, :3] * (1.0 - al)
        out_a = al[:, 0] + out[:, 3] * (1.0 - al[:, 0])
        out = jnp.concatenate([out_rgb, out_a[:, None]], axis=1)
    return out


if __name__ == "__main__":
    key = jax.random.PRNGKey(0)
    B, N = 2, 3
    # model outputs are sigmoided -> uniform [0, 1]
    shape_arguments = jax.random.uniform(
        key, (B, N, NUM_ARGS), dtype=jnp.float32)

    out = shape_renderer_forward(shape_arguments)
    out = jax.block_until_ready(out)
    assert out.shape == (B, 4, IMSIZE, IMSIZE), out.shape

    # cross-check against pure-JAX reference; ramps built as i/(IMSIZE-1) so
    # they match the in-kernel iota ramps exactly.
    ramp = jnp.arange(IMSIZE, dtype=jnp.float32) * jnp.float32(1.0 / (IMSIZE - 1))
    x_ramp, y_ramp = jnp.meshgrid(ramp, ramp, indexing="ij")
    proc = process_shape_arguments(shape_arguments)
    ref = jax.block_until_ready(_render_ref(proc, x_ramp, y_ramp))
    assert jnp.allclose(out, ref, atol=2e-3, rtol=2e-3), (
        float(jnp.max(jnp.abs(out - ref))))

    print("KERNEL_OK")
</pallas_src>

<mosaic_0001>
module attributes {stable_mosaic.version = 11 : i64} {
  func.func @_render_kernel(%arg0: i32, %arg1: memref<2x3x11xf32, #tpu.memory_space<smem>>, %arg2: memref<2x4x32x128xf32, #tpu.memory_space<vmem>>) attributes {dimension_semantics = [#tpu.dimension_semantics<parallel>], iteration_bounds = array<i64: 1>, scalar_prefetch = 0 : i64, scratch_operands = 0 : i64, tpu.core_type = #tpu.core_type<tc>, window_params = [{transform_indices = @transform_0, window_bounds = array<i64: 2, 3, 11>}, {transform_indices = @transform_1, window_bounds = array<i64: 2, 4, 32, 128>}]} {
    %0 = tpu.iota {dimensions = array<i32: 0>} : vector<32x128xi32>
    %c128_i32 = arith.constant 128 : i32
    %1 = vector.broadcast %c128_i32 : i32 to vector<32x128xi32>
    %2 = arith.muli %0, %1 : vector<32x128xi32>
    %3 = tpu.iota {dimensions = array<i32: 1>} : vector<32x128xi32>
    %4 = arith.addi %2, %3 : vector<32x128xi32>
    %c6_i32 = arith.constant 6 : i32
    %5 = vector.broadcast %c6_i32 : i32 to vector<32x128xi32>
    %6 = arith.shrsi %4, %5 : vector<32x128xi32>
    %c63_i32 = arith.constant 63 : i32
    %7 = vector.broadcast %c63_i32 : i32 to vector<32x128xi32>
    %8 = arith.andi %4, %7 : vector<32x128xi32>
    %9 = arith.sitofp %6 : vector<32x128xi32> to vector<32x128xf32>
    %cst = arith.constant 0.0158730168 : f32
    %10 = vector.broadcast %cst : f32 to vector<32x128xf32>
    %11 = arith.mulf %9, %10 : vector<32x128xf32>
    %12 = arith.sitofp %8 : vector<32x128xi32> to vector<32x128xf32>
    %cst_0 = arith.constant 0.0158730168 : f32
    %13 = vector.broadcast %cst_0 : f32 to vector<32x128xf32>
    %14 = arith.mulf %12, %13 : vector<32x128xf32>
    %cst_1 = arith.constant 0.000000e+00 : f32
    %15 = vector.broadcast %cst_1 : f32 to vector<32x128xf32>
    %cst_2 = arith.constant 0.000000e+00 : f32
    %16 = vector.broadcast %cst_2 : f32 to vector<32x128xf32>
    %cst_3 = arith.constant 0.000000e+00 : f32
    %17 = vector.broadcast %cst_3 : f32 to vector<32x128xf32>
    %cst_4 = arith.constant 0.000000e+00 : f32
    %18 = vector.broadcast %cst_4 : f32 to vector<32x128xf32>
    %c0 = arith.constant 0 : index
    %c0_5 = arith.constant 0 : index
    %c0_6 = arith.constant 0 : index
    %19 = memref.load %arg1[%c0, %c0_5, %c0_6] : memref<2x3x11xf32, #tpu.memory_space<smem>>
    %c0_7 = arith.constant 0 : index
    %c0_8 = arith.constant 0 : index
    %c1 = arith.constant 1 : index
    %20 = memref.load %arg1[%c0_7, %c0_8, %c1] : memref<2x3x11xf32, #tpu.memory_space<smem>>
    %c0_9 = arith.constant 0 : index
    %c0_10 = arith.constant 0 : index
    %c2 = arith.constant 2 : index
    %21 = memref.load %arg1[%c0_9, %c0_10, %c2] : memref<2x3x11xf32, #tpu.memory_space<smem>>
    %c0_11 = arith.constant 0 : index
    %c0_12 = arith.constant 0 : index
    %c3 = arith.constant 3 : index
    %22 = memref.load %arg1[%c0_11, %c0_12, %c3] : memref<2x3x11xf32, #tpu.memory_space<smem>>
    %c0_13 = arith.constant 0 : index
    %c0_14 = arith.constant 0 : index
    %c4 = arith.constant 4 : index
    %23 = memref.load %arg1[%c0_13, %c0_14, %c4] : memref<2x3x11xf32, #tpu.memory_space<smem>>
    %c0_15 = arith.constant 0 : index
    %c0_16 = arith.constant 0 : index
    %c5 = arith.constant 5 : index
    %24 = memref.load %arg1[%c0_15, %c0_16, %c5] : memref<2x3x11xf32, #tpu.memory_space<smem>>
    %c0_17 = arith.constant 0 : index
    %c0_18 = arith.constant 0 : index
    %c6 = arith.constant 6 : index
    %25 = memref.load %arg1[%c0_17, %c0_18, %c6] : memref<2x3x11xf32, #tpu.memory_space<smem>>
    %c0_19 = arith.constant 0 : index
    %c0_20 = arith.constant 0 : index
    %c7 = arith.constant 7 : index
    %26 = memref.load %arg1[%c0_19, %c0_20, %c7] : memref<2x3x11xf32, #tpu.memory_space<smem>>
    %c0_21 = arith.constant 0 : index
    %c0_22 = arith.constant 0 : index
    %c8 = arith.constant 8 : index
    %27 = memref.load %arg1[%c0_21, %c0_22, %c8] : memref<2x3x11xf32, #tpu.memory_space<smem>>
    %c0_23 = arith.constant 0 : index
    %c0_24 = arith.constant 0 : index
    %c9 = arith.constant 9 : index
    %28 = memref.load %arg1[%c0_23, %c0_24, %c9] : memref<2x3x11xf32, #tpu.memory_space<smem>>
    %c0_25 = arith.constant 0 : index
    %c0_26 = arith.constant 0 : index
    %c10 = arith.constant 10 : index
    %29 = memref.load %arg1[%c0_25, %c0_26, %c10] : memref<2x3x11xf32, #tpu.memory_space<smem>>
    %30 = vector.broadcast %20 : f32 to vector<32x128xf32>
    %31 = arith.subf %11, %30 : vector<32x128xf32>
    %32 = vector.broadcast %21 : f32 to vector<32x128xf32>
    %33 = arith.subf %14, %32 : vector<32x128xf32>
    %34 = vector.broadcast %24 : f32 to vector<32x128xf32>
    %35 = arith.mulf %31, %34 : vector<32x128xf32>
    %36 = vector.broadcast %25 : f32 to vector<32x128xf32>
    %37 = arith.mulf %33, %36 : vector<32x128xf32>
    %38 = arith.subf %35, %37 : vector<32x128xf32>
    %39 = vector.broadcast %25 : f32 to vector<32x128xf32>
    %40 = arith.mulf %31, %39 : vector<32x128xf32>
    %41 = vector.broadcast %24 : f32 to vector<32x128xf32>
    %42 = arith.mulf %33, %41 : vector<32x128xf32>
    %43 = arith.addf %40, %42 : vector<32x128xf32>
    %44 = vector.broadcast %22 : f32 to vector<32x128xf32>
    %45 = arith.mulf %38, %44 : vector<32x128xf32>
    %46 = vector.broadcast %23 : f32 to vector<32x128xf32>
    %47 = arith.mulf %43, %46 : vector<32x128xf32>
    %48 = arith.mulf %45, %45 : vector<32x128xf32>
    %49 = arith.mulf %47, %47 : vector<32x128xf32>
    %50 = arith.addf %48, %49 : vector<32x128xf32>
    %cst_27 = arith.constant 5.000000e-01 : f32
    %51 = vector.broadcast %cst_27 : f32 to vector<32x128xf32>
    %52 = arith.mulf %51, %50 : vector<32x128xf32>
    %53 = arith.mulf %48, %49 : vector<32x128xf32>
    %54 = vector.broadcast %26 : f32 to vector<32x128xf32>
    %55 = arith.mulf %53, %54 : vector<32x128xf32>
    %56 = arith.mulf %52, %52 : vector<32x128xf32>
    %57 = arith.subf %56, %55 : vector<32x128xf32>
    %cst_28 = arith.constant 9.99999993E-9 : f32
    %58 = vector.broadcast %cst_28 : f32 to vector<32x128xf32>
    %59 = arith.addf %57, %58 : vector<32x128xf32>
    %60 = math.sqrt %59 : vector<32x128xf32>
    %61 = arith.addf %52, %60 : vector<32x128xf32>
    %cst_29 = arith.constant 9.99999993E-9 : f32
    %62 = vector.broadcast %cst_29 : f32 to vector<32x128xf32>
    %63 = arith.addf %61, %62 : vector<32x128xf32>
    %64 = math.sqrt %63 : vector<32x128xf32>
    %cst_30 = arith.constant 1.000000e+00 : f32
    %65 = vector.broadcast %cst_30 : f32 to vector<32x128xf32>
    %66 = arith.subf %65, %64 : vector<32x128xf32>
    %67 = vector.broadcast %19 : f32 to vector<32x128xf32>
    %68 = arith.mulf %67, %66 : vector<32x128xf32>
    %cst_31 = arith.constant 5.000000e-01 : f32
    %69 = vector.broadcast %cst_31 : f32 to vector<32x128xf32>
    %70 = arith.mulf %69, %68 : vector<32x128xf32>
    %71 = math.tanh %70 : vector<32x128xf32>
    %cst_32 = arith.constant 5.000000e-01 : f32
    %72 = vector.broadcast %cst_32 : f32 to vector<32x128xf32>
    %73 = arith.mulf %72, %71 : vector<32x128xf32>
    %cst_33 = arith.constant 5.000000e-01 : f32
    %74 = vector.broadcast %cst_33 : f32 to vector<32x128xf32>
    %75 = arith.addf %73, %74 : vector<32x128xf32>
    %cst_34 = arith.constant 1.000000e+00 : f32
    %76 = vector.broadcast %cst_34 : f32 to vector<32x128xf32>
    %77 = arith.subf %76, %75 : vector<32x128xf32>
    %78 = vector.broadcast %27 : f32 to vector<32x128xf32>
    %79 = arith.mulf %78, %75 : vector<32x128xf32>
    %80 = arith.mulf %15, %77 : vector<32x128xf32>
    %81 = arith.addf %79, %80 : vector<32x128xf32>
    %82 = vector.broadcast %28 : f32 to vector<32x128xf32>
    %83 = arith.mulf %82, %75 : vector<32x128xf32>
    %84 = arith.mulf %16, %77 : vector<32x128xf32>
    %85 = arith.addf %83, %84 : vector<32x128xf32>
    %86 = vector.broadcast %29 : f32 to vector<32x128xf32>
    %87 = arith.mulf %86, %75 : vector<32x128xf32>
    %88 = arith.mulf %17, %77 : vector<32x128xf32>
    %89 = arith.addf %87, %88 : vector<32x128xf32>
    %90 = arith.mulf %18, %77 : vector<32x128xf32>
    %91 = arith.addf %75, %90 : vector<32x128xf32>
    %c0_35 = arith.constant 0 : index
    %c1_36 = arith.constant 1 : index
    %c0_37 = arith.constant 0 : index
    %92 = memref.load %arg1[%c0_35, %c1_36, %c0_37] : memref<2x3x11xf32, #tpu.memory_space<smem>>
    %c0_38 = arith.constant 0 : index
    %c1_39 = arith.constant 1 : index
    %c1_40 = arith.constant 1 : index
    %93 = memref.load %arg1[%c0_38, %c1_39, %c1_40] : memref<2x3x11xf32, #tpu.memory_space<smem>>
    %c0_41 = arith.constant 0 : index
    %c1_42 = arith.constant 1 : index
    %c2_43 = arith.constant 2 : index
    %94 = memref.load %arg1[%c0_41, %c1_42, %c2_43] : memref<2x3x11xf32, #tpu.memory_space<smem>>
    %c0_44 = arith.constant 0 : index
    %c1_45 = arith.constant 1 : index
    %c3_46 = arith.constant 3 : index
    %95 = memref.load %arg1[%c0_44, %c1_45, %c3_46] : memref<2x3x11xf32, #tpu.memory_space<smem>>
    %c0_47 = arith.constant 0 : index
    %c1_48 = arith.constant 1 : index
    %c4_49 = arith.constant 4 : index
    %96 = memref.load %arg1[%c0_47, %c1_48, %c4_49] : memref<2x3x11xf32, #tpu.memory_space<smem>>
    %c0_50 = arith.constant 0 : index
    %c1_51 = arith.constant 1 : index
    %c5_52 = arith.constant 5 : index
    %97 = memref.load %arg1[%c0_50, %c1_51, %c5_52] : memref<2x3x11xf32, #tpu.memory_space<smem>>
    %c0_53 = arith.constant 0 : index
    %c1_54 = arith.constant 1 : index
    %c6_55 = arith.constant 6 : index
    %98 = memref.load %arg1[%c0_53, %c1_54, %c6_55] : memref<2x3x11xf32, #tpu.memory_space<smem>>
    %c0_56 = arith.constant 0 : index
    %c1_57 = arith.constant 1 : index
    %c7_58 = arith.constant 7 : index
    %99 = memref.load %arg1[%c0_56, %c1_57, %c7_58] : memref<2x3x11xf32, #tpu.memory_space<smem>>
    %c0_59 = arith.constant 0 : index
    %c1_60 = arith.constant 1 : index
    %c8_61 = arith.constant 8 : index
    %100 = memref.load %arg1[%c0_59, %c1_60, %c8_61] : memref<2x3x11xf32, #tpu.memory_space<smem>>
    %c0_62 = arith.constant 0 : index
    %c1_63 = arith.constant 1 : index
    %c9_64 = arith.constant 9 : index
    %101 = memref.load %arg1[%c0_62, %c1_63, %c9_64] : memref<2x3x11xf32, #tpu.memory_space<smem>>
    %c0_65 = arith.constant 0 : index
    %c1_66 = arith.constant 1 : index
    %c10_67 = arith.constant 10 : index
    %102 = memref.load %arg1[%c0_65, %c1_66, %c10_67] : memref<2x3x11xf32, #tpu.memory_space<smem>>
    %103 = vector.broadcast %93 : f32 to vector<32x128xf32>
    %104 = arith.subf %11, %103 : vector<32x128xf32>
    %105 = vector.broadcast %94 : f32 to vector<32x128xf32>
    %106 = arith.subf %14, %105 : vector<32x128xf32>
    %107 = vector.broadcast %97 : f32 to vector<32x128xf32>
    %108 = arith.mulf %104, %107 : vector<32x128xf32>
    %109 = vector.broadcast %98 : f32 to vector<32x128xf32>
    %110 = arith.mulf %106, %109 : vector<32x128xf32>
    %111 = arith.subf %108, %110 : vector<32x128xf32>
    %112 = vector.broadcast %98 : f32 to vector<32x128xf32>
    %113 = arith.mulf %104, %112 : vector<32x128xf32>
    %114 = vector.broadcast %97 : f32 to vector<32x128xf32>
    %115 = arith.mulf %106, %114 : vector<32x128xf32>
    %116 = arith.addf %113, %115 : vector<32x128xf32>
    %117 = vector.broadcast %95 : f32 to vector<32x128xf32>
    %118 = arith.mulf %111, %117 : vector<32x128xf32>
    %119 = vector.broadcast %96 : f32 to vector<32x128xf32>
    %120 = arith.mulf %116, %119 : vector<32x128xf32>
    %121 = arith.mulf %118, %118 : vector<32x128xf32>
    %122 = arith.mulf %120, %120 : vector<32x128xf32>
    %123 = arith.addf %121, %122 : vector<32x128xf32>
    %cst_68 = arith.constant 5.000000e-01 : f32
    %124 = vector.broadcast %cst_68 : f32 to vector<32x128xf32>
    %125 = arith.mulf %124, %123 : vector<32x128xf32>
    %126 = arith.mulf %121, %122 : vector<32x128xf32>
    %127 = vector.broadcast %99 : f32 to vector<32x128xf32>
    %128 = arith.mulf %126, %127 : vector<32x128xf32>
    %129 = arith.mulf %125, %125 : vector<32x128xf32>
    %130 = arith.subf %129, %128 : vector<32x128xf32>
    %cst_69 = arith.constant 9.99999993E-9 : f32
    %131 = vector.broadcast %cst_69 : f32 to vector<32x128xf32>
    %132 = arith.addf %130, %131 : vector<32x128xf32>
    %133 = math.sqrt %132 : vector<32x128xf32>
    %134 = arith.addf %125, %133 : vector<32x128xf32>
    %cst_70 = arith.constant 9.99999993E-9 : f32
    %135 = vector.broadcast %cst_70 : f32 to vector<32x128xf32>
    %136 = arith.addf %134, %135 : vector<32x128xf32>
    %137 = math.sqrt %136 : vector<32x128xf32>
    %cst_71 = arith.constant 1.000000e+00 : f32
    %138 = vector.broadcast %cst_71 : f32 to vector<32x128xf32>
    %139 = arith.subf %138, %137 : vector<32x128xf32>
    %140 = vector.broadcast %92 : f32 to vector<32x128xf32>
    %141 = arith.mulf %140, %139 : vector<32x128xf32>
    %cst_72 = arith.constant 5.000000e-01 : f32
    %142 = vector.broadcast %cst_72 : f32 to vector<32x128xf32>
    %143 = arith.mulf %142, %141 : vector<32x128xf32>
    %144 = math.tanh %143 : vector<32x128xf32>
    %cst_73 = arith.constant 5.000000e-01 : f32
    %145 = vector.broadcast %cst_73 : f32 to vector<32x128xf32>
    %146 = arith.mulf %145, %144 : vector<32x128xf32>
    %cst_74 = arith.constant 5.000000e-01 : f32
    %147 = vector.broadcast %cst_74 : f32 to vector<32x128xf32>
    %148 = arith.addf %146, %147 : vector<32x128xf32>
    %cst_75 = arith.constant 1.000000e+00 : f32
    %149 = vector.broadcast %cst_75 : f32 to vector<32x128xf32>
    %150 = arith.subf %149, %148 : vector<32x128xf32>
    %151 = vector.broadcast %100 : f32 to vector<32x128xf32>
    %152 = arith.mulf %151, %148 : vector<32x128xf32>
    %153 = arith.mulf %81, %150 : vector<32x128xf32>
    %154 = arith.addf %152, %153 : vector<32x128xf32>
    %155 = vector.broadcast %101 : f32 to vector<32x128xf32>
    %156 = arith.mulf %155, %148 : vector<32x128xf32>
    %157 = arith.mulf %85, %150 : vector<32x128xf32>
    %158 = arith.addf %156, %157 : vector<32x128xf32>
    %159 = vector.broadcast %102 : f32 to vector<32x128xf32>
    %160 = arith.mulf %159, %148 : vector<32x128xf32>
    %161 = arith.mulf %89, %150 : vector<32x128xf32>
    %162 = arith.addf %160, %161 : vector<32x128xf32>
    %163 = arith.mulf %91, %150 : vector<32x128xf32>
    %164 = arith.addf %148, %163 : vector<32x128xf32>
    %c0_76 = arith.constant 0 : index
    %c2_77 = arith.constant 2 : index
    %c0_78 = arith.constant 0 : index
    %165 = memref.load %arg1[%c0_76, %c2_77, %c0_78] : memref<2x3x11xf32, #tpu.memory_space<smem>>
    %c0_79 = arith.constant 0 : index
    %c2_80 = arith.constant 2 : index
    %c1_81 = arith.constant 1 : index
    %166 = memref.load %arg1[%c0_79, %c2_80, %c1_81] : memref<2x3x11xf32, #tpu.memory_space<smem>>
    %c0_82 = arith.constant 0 : index
    %c2_83 = arith.constant 2 : index
    %c2_84 = arith.constant 2 : index
    %167 = memref.load %arg1[%c0_82, %c2_83, %c2_84] : memref<2x3x11xf32, #tpu.memory_space<smem>>
    %c0_85 = arith.constant 0 : index
    %c2_86 = arith.constant 2 : index
    %c3_87 = arith.constant 3 : index
    %168 = memref.load %arg1[%c0_85, %c2_86, %c3_87] : memref<2x3x11xf32, #tpu.memory_space<smem>>
    %c0_88 = arith.constant 0 : index
    %c2_89 = arith.constant 2 : index
    %c4_90 = arith.constant 4 : index
    %169 = memref.load %arg1[%c0_88, %c2_89, %c4_90] : memref<2x3x11xf32, #tpu.memory_space<smem>>
    %c0_91 = arith.constant 0 : index
    %c2_92 = arith.constant 2 : index
    %c5_93 = arith.constant 5 : index
    %170 = memref.load %arg1[%c0_91, %c2_92, %c5_93] : memref<2x3x11xf32, #tpu.memory_space<smem>>
    %c0_94 = arith.constant 0 : index
    %c2_95 = arith.constant 2 : index
    %c6_96 = arith.constant 6 : index
    %171 = memref.load %arg1[%c0_94, %c2_95, %c6_96] : memref<2x3x11xf32, #tpu.memory_space<smem>>
    %c0_97 = arith.constant 0 : index
    %c2_98 = arith.constant 2 : index
    %c7_99 = arith.constant 7 : index
    %172 = memref.load %arg1[%c0_97, %c2_98, %c7_99] : memref<2x3x11xf32, #tpu.memory_space<smem>>
    %c0_100 = arith.constant 0 : index
    %c2_101 = arith.constant 2 : index
    %c8_102 = arith.constant 8 : index
    %173 = memref.load %arg1[%c0_100, %c2_101, %c8_102] : memref<2x3x11xf32, #tpu.memory_space<smem>>
    %c0_103 = arith.constant 0 : index
    %c2_104 = arith.constant 2 : index
    %c9_105 = arith.constant 9 : index
    %174 = memref.load %arg1[%c0_103, %c2_104, %c9_105] : memref<2x3x11xf32, #tpu.memory_space<smem>>
    %c0_106 = arith.constant 0 : index
    %c2_107 = arith.constant 2 : index
    %c10_108 = arith.constant 10 : index
    %175 = memref.load %arg1[%c0_106, %c2_107, %c10_108] : memref<2x3x11xf32, #tpu.memory_space<smem>>
    %176 = vector.broadcast %166 : f32 to vector<32x128xf32>
    %177 = arith.subf %11, %176 : vector<32x128xf32>
    %178 = vector.broadcast %167 : f32 to vector<32x128xf32>
    %179 = arith.subf %14, %178 : vector<32x128xf32>
    %180 = vector.broadcast %170 : f32 to vector<32x128xf32>
    %181 = arith.mulf %177, %180 : vector<32x128xf32>
    %182 = vector.broadcast %171 : f32 to vector<32x128xf32>
    %183 = arith.mulf %179, %182 : vector<32x128xf32>
    %184 = arith.subf %181, %183 : vector<32x128xf32>
    %185 = vector.broadcast %171 : f32 to vector<32x128xf32>
    %186 = arith.mulf %177, %185 : vector<32x128xf32>
    %187 = vector.broadcast %170 : f32 to vector<32x128xf32>
    %188 = arith.mulf %179, %187 : vector<32x128xf32>
    %189 = arith.addf %186, %188 : vector<32x128xf32>
    %190 = vector.broadcast %168 : f32 to vector<32x128xf32>
    %191 = arith.mulf %184, %190 : vector<32x128xf32>
    %192 = vector.broadcast %169 : f32 to vector<32x128xf32>
    %193 = arith.mulf %189, %192 : vector<32x128xf32>
    %194 = arith.mulf %191, %191 : vector<32x128xf32>
    %195 = arith.mulf %193, %193 : vector<32x128xf32>
    %196 = arith.addf %194, %195 : vector<32x128xf32>
    %cst_109 = arith.constant 5.000000e-01 : f32
    %197 = vector.broadcast %cst_109 : f32 to vector<32x128xf32>
    %198 = arith.mulf %197, %196 : vector<32x128xf32>
    %199 = arith.mulf %194, %195 : vector<32x128xf32>
    %200 = vector.broadcast %172 : f32 to vector<32x128xf32>
    %201 = arith.mulf %199, %200 : vector<32x128xf32>
    %202 = arith.mulf %198, %198 : vector<32x128xf32>
    %203 = arith.subf %202, %201 : vector<32x128xf32>
    %cst_110 = arith.constant 9.99999993E-9 : f32
    %204 = vector.broadcast %cst_110 : f32 to vector<32x128xf32>
    %205 = arith.addf %203, %204 : vector<32x128xf32>
    %206 = math.sqrt %205 : vector<32x128xf32>
    %207 = arith.addf %198, %206 : vector<32x128xf32>
    %cst_111 = arith.constant 9.99999993E-9 : f32
    %208 = vector.broadcast %cst_111 : f32 to vector<32x128xf32>
    %209 = arith.addf %207, %208 : vector<32x128xf32>
    %210 = math.sqrt %209 : vector<32x128xf32>
    %cst_112 = arith.constant 1.000000e+00 : f32
    %211 = vector.broadcast %cst_112 : f32 to vector<32x128xf32>
    %212 = arith.subf %211, %210 : vector<32x128xf32>
    %213 = vector.broadcast %165 : f32 to vector<32x128xf32>
    %214 = arith.mulf %213, %212 : vector<32x128xf32>
    %cst_113 = arith.constant 5.000000e-01 : f32
    %215 = vector.broadcast %cst_113 : f32 to vector<32x128xf32>
    %216 = arith.mulf %215, %214 : vector<32x128xf32>
    %217 = math.tanh %216 : vector<32x128xf32>
    %cst_114 = arith.constant 5.000000e-01 : f32
    %218 = vector.broadcast %cst_114 : f32 to vector<32x128xf32>
    %219 = arith.mulf %218, %217 : vector<32x128xf32>
    %cst_115 = arith.constant 5.000000e-01 : f32
    %220 = vector.broadcast %cst_115 : f32 to vector<32x128xf32>
    %221 = arith.addf %219, %220 : vector<32x128xf32>
    %cst_116 = arith.constant 1.000000e+00 : f32
    %222 = vector.broadcast %cst_116 : f32 to vector<32x128xf32>
    %223 = arith.subf %222, %221 : vector<32x128xf32>
    %224 = vector.broadcast %173 : f32 to vector<32x128xf32>
    %225 = arith.mulf %224, %221 : vector<32x128xf32>
    %226 = arith.mulf %154, %223 : vector<32x128xf32>
    %227 = arith.addf %225, %226 : vector<32x128xf32>
    %228 = vector.broadcast %174 : f32 to vector<32x128xf32>
    %229 = arith.mulf %228, %221 : vector<32x128xf32>
    %230 = arith.mulf %158, %223 : vector<32x128xf32>
    %231 = arith.addf %229, %230 : vector<32x128xf32>
    %232 = vector.broadcast %175 : f32 to vector<32x128xf32>
    %233 = arith.mulf %232, %221 : vector<32x128xf32>
    %234 = arith.mulf %162, %223 : vector<32x128xf32>
    %235 = arith.addf %233, %234 : vector<32x128xf32>
    %236 = arith.mulf %164, %223 : vector<32x128xf32>
    %237 = arith.addf %221, %236 : vector<32x128xf32>
    %c0_117 = arith.constant 0 : index
    %c0_118 = arith.constant 0 : index
    %c0_119 = arith.constant 0 : index
    %c0_120 = arith.constant 0 : index
    %238 = vector.load %arg2[%c0_117, %c0_118, %c0_119, %c0_120] : memref<2x4x32x128xf32, #tpu.memory_space<vmem>>, vector<1x1x32x128xf32>
    %239 = vector.shape_cast %238 : vector<1x1x32x128xf32> to vector<32x128xf32>
    %240 = vector.shape_cast %227 : vector<32x128xf32> to vector<1x1x32x128xf32>
    tpu.vector_store %arg2[%c0_117, %c0_118, %c0_119, %c0_120], %240 {strides = array<i32>} : memref<2x4x32x128xf32, #tpu.memory_space<vmem>>, vector<1x1x32x128xf32>,
    %c0_121 = arith.constant 0 : index
    %c1_122 = arith.constant 1 : index
    %c0_123 = arith.constant 0 : index
    %c0_124 = arith.constant 0 : index
    %241 = vector.load %arg2[%c0_121, %c1_122, %c0_123, %c0_124] : memref<2x4x32x128xf32, #tpu.memory_space<vmem>>, vector<1x1x32x128xf32>
    %242 = vector.shape_cast %241 : vector<1x1x32x128xf32> to vector<32x128xf32>
    %243 = vector.shape_cast %231 : vector<32x128xf32> to vector<1x1x32x128xf32>
    tpu.vector_store %arg2[%c0_121, %c1_122, %c0_123, %c0_124], %243 {strides = array<i32>} : memref<2x4x32x128xf32, #tpu.memory_space<vmem>>, vector<1x1x32x128xf32>,
    %c0_125 = arith.constant 0 : index
    %c2_126 = arith.constant 2 : index
    %c0_127 = arith.constant 0 : index
    %c0_128 = arith.constant 0 : index
    %244 = vector.load %arg2[%c0_125, %c2_126, %c0_127, %c0_128] : memref<2x4x32x128xf32, #tpu.memory_space<vmem>>, vector<1x1x32x128xf32>
    %245 = vector.shape_cast %244 : vector<1x1x32x128xf32> to vector<32x128xf32>
    %246 = vector.shape_cast %235 : vector<32x128xf32> to vector<1x1x32x128xf32>
    tpu.vector_store %arg2[%c0_125, %c2_126, %c0_127, %c0_128], %246 {strides = array<i32>} : memref<2x4x32x128xf32, #tpu.memory_space<vmem>>, vector<1x1x32x128xf32>,
    %c0_129 = arith.constant 0 : index
    %c3_130 = arith.constant 3 : index
    %c0_131 = arith.constant 0 : index
    %c0_132 = arith.constant 0 : index
    %247 = vector.load %arg2[%c0_129, %c3_130, %c0_131, %c0_132] : memref<2x4x32x128xf32, #tpu.memory_space<vmem>>, vector<1x1x32x128xf32>
    %248 = vector.shape_cast %247 : vector<1x1x32x128xf32> to vector<32x128xf32>
    %249 = vector.shape_cast %237 : vector<32x128xf32> to vector<1x1x32x128xf32>
    tpu.vector_store %arg2[%c0_129, %c3_130, %c0_131, %c0_132], %249 {strides = array<i32>} : memref<2x4x32x128xf32, #tpu.memory_space<vmem>>, vector<1x1x32x128xf32>,
    %cst_133 = arith.constant 0.000000e+00 : f32
    %250 = vector.broadcast %cst_133 : f32 to vector<32x128xf32>
    %cst_134 = arith.constant 0.000000e+00 : f32
    %251 = vector.broadcast %cst_134 : f32 to vector<32x128xf32>
    %cst_135 = arith.constant 0.000000e+00 : f32
    %252 = vector.broadcast %cst_135 : f32 to vector<32x128xf32>
    %cst_136 = arith.constant 0.000000e+00 : f32
    %253 = vector.broadcast %cst_136 : f32 to vector<32x128xf32>
    %c1_137 = arith.constant 1 : index
    %c0_138 = arith.constant 0 : index
    %c0_139 = arith.constant 0 : index
    %254 = memref.load %arg1[%c1_137, %c0_138, %c0_139] : memref<2x3x11xf32, #tpu.memory_space<smem>>
    %c1_140 = arith.constant 1 : index
    %c0_141 = arith.constant 0 : index
    %c1_142 = arith.constant 1 : index
    %255 = memref.load %arg1[%c1_140, %c0_141, %c1_142] : memref<2x3x11xf32, #tpu.memory_space<smem>>
    %c1_143 = arith.constant 1 : index
    %c0_144 = arith.constant 0 : index
    %c2_145 = arith.constant 2 : index
    %256 = memref.load %arg1[%c1_143, %c0_144, %c2_145] : memref<2x3x11xf32, #tpu.memory_space<smem>>
    %c1_146 = arith.constant 1 : index
    %c0_147 = arith.constant 0 : index
    %c3_148 = arith.constant 3 : index
    %257 = memref.load %arg1[%c1_146, %c0_147, %c3_148] : memref<2x3x11xf32, #tpu.memory_space<smem>>
    %c1_149 = arith.constant 1 : index
    %c0_150 = arith.constant 0 : index
    %c4_151 = arith.constant 4 : index
    %258 = memref.load %arg1[%c1_149, %c0_150, %c4_151] : memref<2x3x11xf32, #tpu.memory_space<smem>>
    %c1_152 = arith.constant 1 : index
    %c0_153 = arith.constant 0 : index
    %c5_154 = arith.constant 5 : index
    %259 = memref.load %arg1[%c1_152, %c0_153, %c5_154] : memref<2x3x11xf32, #tpu.memory_space<smem>>
    %c1_155 = arith.constant 1 : index
    %c0_156 = arith.constant 0 : index
    %c6_157 = arith.constant 6 : index
    %260 = memref.load %arg1[%c1_155, %c0_156, %c6_157] : memref<2x3x11xf32, #tpu.memory_space<smem>>
    %c1_158 = arith.constant 1 : index
    %c0_159 = arith.constant 0 : index
    %c7_160 = arith.constant 7 : index
    %261 = memref.load %arg1[%c1_158, %c0_159, %c7_160] : memref<2x3x11xf32, #tpu.memory_space<smem>>
    %c1_161 = arith.constant 1 : index
    %c0_162 = arith.constant 0 : index
    %c8_163 = arith.constant 8 : index
    %262 = memref.load %arg1[%c1_161, %c0_162, %c8_163] : memref<2x3x11xf32, #tpu.memory_space<smem>>
    %c1_164 = arith.constant 1 : index
    %c0_165 = arith.constant 0 : index
    %c9_166 = arith.constant 9 : index
    %263 = memref.load %arg1[%c1_164, %c0_165, %c9_166] : memref<2x3x11xf32, #tpu.memory_space<smem>>
    %c1_167 = arith.constant 1 : index
    %c0_168 = arith.constant 0 : index
    %c10_169 = arith.constant 10 : index
    %264 = memref.load %arg1[%c1_167, %c0_168, %c10_169] : memref<2x3x11xf32, #tpu.memory_space<smem>>
    %265 = vector.broadcast %255 : f32 to vector<32x128xf32>
    %266 = arith.subf %11, %265 : vector<32x128xf32>
    %267 = vector.broadcast %256 : f32 to vector<32x128xf32>
    %268 = arith.subf %14, %267 : vector<32x128xf32>
    %269 = vector.broadcast %259 : f32 to vector<32x128xf32>
    %270 = arith.mulf %266, %269 : vector<32x128xf32>
    %271 = vector.broadcast %260 : f32 to vector<32x128xf32>
    %272 = arith.mulf %268, %271 : vector<32x128xf32>
    %273 = arith.subf %270, %272 : vector<32x128xf32>
    %274 = vector.broadcast %260 : f32 to vector<32x128xf32>
    %275 = arith.mulf %266, %274 : vector<32x128xf32>
    %276 = vector.broadcast %259 : f32 to vector<32x128xf32>
    %277 = arith.mulf %268, %276 : vector<32x128xf32>
    %278 = arith.addf %275, %277 : vector<32x128xf32>
    %279 = vector.broadcast %257 : f32 to vector<32x128xf32>
    %280 = arith.mulf %273, %279 : vector<32x128xf32>
    %281 = vector.broadcast %258 : f32 to vector<32x128xf32>
    %282 = arith.mulf %278, %281 : vector<32x128xf32>
    %283 = arith.mulf %280, %280 : vector<32x128xf32>
    %284 = arith.mulf %282, %282 : vector<32x128xf32>
    %285 = arith.addf %283, %284 : vector<32x128xf32>
    %cst_170 = arith.constant 5.000000e-01 : f32
    %286 = vector.broadcast %cst_170 : f32 to vector<32x128xf32>
    %287 = arith.mulf %286, %285 : vector<32x128xf32>
    %288 = arith.mulf %283, %284 : vector<32x128xf32>
    %289 = vector.broadcast %261 : f32 to vector<32x128xf32>
    %290 = arith.mulf %288, %289 : vector<32x128xf32>
    %291 = arith.mulf %287, %287 : vector<32x128xf32>
    %292 = arith.subf %291, %290 : vector<32x128xf32>
    %cst_171 = arith.constant 9.99999993E-9 : f32
    %293 = vector.broadcast %cst_171 : f32 to vector<32x128xf32>
    %294 = arith.addf %292, %293 : vector<32x128xf32>
    %295 = math.sqrt %294 : vector<32x128xf32>
    %296 = arith.addf %287, %295 : vector<32x128xf32>
    %cst_172 = arith.constant 9.99999993E-9 : f32
    %297 = vector.broadcast %cst_172 : f32 to vector<32x128xf32>
    %298 = arith.addf %296, %297 : vector<32x128xf32>
    %299 = math.sqrt %298 : vector<32x128xf32>
    %cst_173 = arith.constant 1.000000e+00 : f32
    %300 = vector.broadcast %cst_173 : f32 to vector<32x128xf32>
    %301 = arith.subf %300, %299 : vector<32x128xf32>
    %302 = vector.broadcast %254 : f32 to vector<32x128xf32>
    %303 = arith.mulf %302, %301 : vector<32x128xf32>
    %cst_174 = arith.constant 5.000000e-01 : f32
    %304 = vector.broadcast %cst_174 : f32 to vector<32x128xf32>
    %305 = arith.mulf %304, %303 : vector<32x128xf32>
    %306 = math.tanh %305 : vector<32x128xf32>
    %cst_175 = arith.constant 5.000000e-01 : f32
    %307 = vector.broadcast %cst_175 : f32 to vector<32x128xf32>
    %308 = arith.mulf %307, %306 : vector<32x128xf32>
    %cst_176 = arith.constant 5.000000e-01 : f32
    %309 = vector.broadcast %cst_176 : f32 to vector<32x128xf32>
    %310 = arith.addf %308, %309 : vector<32x128xf32>
    %cst_177 = arith.constant 1.000000e+00 : f32
    %311 = vector.broadcast %cst_177 : f32 to vector<32x128xf32>
    %312 = arith.subf %311, %310 : vector<32x128xf32>
    %313 = vector.broadcast %262 : f32 to vector<32x128xf32>
    %314 = arith.mulf %313, %310 : vector<32x128xf32>
    %315 = arith.mulf %250, %312 : vector<32x128xf32>
    %316 = arith.addf %314, %315 : vector<32x128xf32>
    %317 = vector.broadcast %263 : f32 to vector<32x128xf32>
    %318 = arith.mulf %317, %310 : vector<32x128xf32>
    %319 = arith.mulf %251, %312 : vector<32x128xf32>
    %320 = arith.addf %318, %319 : vector<32x128xf32>
    %321 = vector.broadcast %264 : f32 to vector<32x128xf32>
    %322 = arith.mulf %321, %310 : vector<32x128xf32>
    %323 = arith.mulf %252, %312 : vector<32x128xf32>
    %324 = arith.addf %322, %323 : vector<32x128xf32>
    %325 = arith.mulf %253, %312 : vector<32x128xf32>
    %326 = arith.addf %310, %325 : vector<32x128xf32>
    %c1_178 = arith.constant 1 : index
    %c1_179 = arith.constant 1 : index
    %c0_180 = arith.constant 0 : index
    %327 = memref.load %arg1[%c1_178, %c1_179, %c0_180] : memref<2x3x11xf32, #tpu.memory_space<smem>>
    %c1_181 = arith.constant 1 : index
    %c1_182 = arith.constant 1 : index
    %c1_183 = arith.constant 1 : index
    %328 = memref.load %arg1[%c1_181, %c1_182, %c1_183] : memref<2x3x11xf32, #tpu.memory_space<smem>>
    %c1_184 = arith.constant 1 : index
    %c1_185 = arith.constant 1 : index
    %c2_186 = arith.constant 2 : index
    %329 = memref.load %arg1[%c1_184, %c1_185, %c2_186] : memref<2x3x11xf32, #tpu.memory_space<smem>>
    %c1_187 = arith.constant 1 : index
    %c1_188 = arith.constant 1 : index
    %c3_189 = arith.constant 3 : index
    %330 = memref.load %arg1[%c1_187, %c1_188, %c3_189] : memref<2x3x11xf32, #tpu.memory_space<smem>>
    %c1_190 = arith.constant 1 : index
    %c1_191 = arith.constant 1 : index
    %c4_192 = arith.constant 4 : index
    %331 = memref.load %arg1[%c1_190, %c1_191, %c4_192] : memref<2x3x11xf32, #tpu.memory_space<smem>>
    %c1_193 = arith.constant 1 : index
    %c1_194 = arith.constant 1 : index
    %c5_195 = arith.constant 5 : index
    %332 = memref.load %arg1[%c1_193, %c1_194, %c5_195] : memref<2x3x11xf32, #tpu.memory_space<smem>>
    %c1_196 = arith.constant 1 : index
    %c1_197 = arith.constant 1 : index
    %c6_198 = arith.constant 6 : index
    %333 = memref.load %arg1[%c1_196, %c1_197, %c6_198] : memref<2x3x11xf32, #tpu.memory_space<smem>>
    %c1_199 = arith.constant 1 : index
    %c1_200 = arith.constant 1 : index
    %c7_201 = arith.constant 7 : index
    %334 = memref.load %arg1[%c1_199, %c1_200, %c7_201] : memref<2x3x11xf32, #tpu.memory_space<smem>>
    %c1_202 = arith.constant 1 : index
    %c1_203 = arith.constant 1 : index
    %c8_204 = arith.constant 8 : index
    %335 = memref.load %arg1[%c1_202, %c1_203, %c8_204] : memref<2x3x11xf32, #tpu.memory_space<smem>>
    %c1_205 = arith.constant 1 : index
    %c1_206 = arith.constant 1 : index
    %c9_207 = arith.constant 9 : index
    %336 = memref.load %arg1[%c1_205, %c1_206, %c9_207] : memref<2x3x11xf32, #tpu.memory_space<smem>>
    %c1_208 = arith.constant 1 : index
    %c1_209 = arith.constant 1 : index
    %c10_210 = arith.constant 10 : index
    %337 = memref.load %arg1[%c1_208, %c1_209, %c10_210] : memref<2x3x11xf32, #tpu.memory_space<smem>>
    %338 = vector.broadcast %328 : f32 to vector<32x128xf32>
    %339 = arith.subf %11, %338 : vector<32x128xf32>
    %340 = vector.broadcast %329 : f32 to vector<32x128xf32>
    %341 = arith.subf %14, %340 : vector<32x128xf32>
    %342 = vector.broadcast %332 : f32 to vector<32x128xf32>
    %343 = arith.mulf %339, %342 : vector<32x128xf32>
    %344 = vector.broadcast %333 : f32 to vector<32x128xf32>
    %345 = arith.mulf %341, %344 : vector<32x128xf32>
    %346 = arith.subf %343, %345 : vector<32x128xf32>
    %347 = vector.broadcast %333 : f32 to vector<32x128xf32>
    %348 = arith.mulf %339, %347 : vector<32x128xf32>
    %349 = vector.broadcast %332 : f32 to vector<32x128xf32>
    %350 = arith.mulf %341, %349 : vector<32x128xf32>
    %351 = arith.addf %348, %350 : vector<32x128xf32>
    %352 = vector.broadcast %330 : f32 to vector<32x128xf32>
    %353 = arith.mulf %346, %352 : vector<32x128xf32>
    %354 = vector.broadcast %331 : f32 to vector<32x128xf32>
    %355 = arith.mulf %351, %354 : vector<32x128xf32>
    %356 = arith.mulf %353, %353 : vector<32x128xf32>
    %357 = arith.mulf %355, %355 : vector<32x128xf32>
    %358 = arith.addf %356, %357 : vector<32x128xf32>
    %cst_211 = arith.constant 5.000000e-01 : f32
    %359 = vector.broadcast %cst_211 : f32 to vector<32x128xf32>
    %360 = arith.mulf %359, %358 : vector<32x128xf32>
    %361 = arith.mulf %356, %357 : vector<32x128xf32>
    %362 = vector.broadcast %334 : f32 to vector<32x128xf32>
    %363 = arith.mulf %361, %362 : vector<32x128xf32>
    %364 = arith.mulf %360, %360 : vector<32x128xf32>
    %365 = arith.subf %364, %363 : vector<32x128xf32>
    %cst_212 = arith.constant 9.99999993E-9 : f32
    %366 = vector.broadcast %cst_212 : f32 to vector<32x128xf32>
    %367 = arith.addf %365, %366 : vector<32x128xf32>
    %368 = math.sqrt %367 : vector<32x128xf32>
    %369 = arith.addf %360, %368 : vector<32x128xf32>
    %cst_213 = arith.constant 9.99999993E-9 : f32
    %370 = vector.broadcast %cst_213 : f32 to vector<32x128xf32>
    %371 = arith.addf %369, %370 : vector<32x128xf32>
    %372 = math.sqrt %371 : vector<32x128xf32>
    %cst_214 = arith.constant 1.000000e+00 : f32
    %373 = vector.broadcast %cst_214 : f32 to vector<32x128xf32>
    %374 = arith.subf %373, %372 : vector<32x128xf32>
    %375 = vector.broadcast %327 : f32 to vector<32x128xf32>
    %376 = arith.mulf %375, %374 : vector<32x128xf32>
    %cst_215 = arith.constant 5.000000e-01 : f32
    %377 = vector.broadcast %cst_215 : f32 to vector<32x128xf32>
    %378 = arith.mulf %377, %376 : vector<32x128xf32>
    %379 = math.tanh %378 : vector<32x128xf32>
    %cst_216 = arith.constant 5.000000e-01 : f32
    %380 = vector.broadcast %cst_216 : f32 to vector<32x128xf32>
    %381 = arith.mulf %380, %379 : vector<32x128xf32>
    %cst_217 = arith.constant 5.000000e-01 : f32
    %382 = vector.broadcast %cst_217 : f32 to vector<32x128xf32>
    %383 = arith.addf %381, %382 : vector<32x128xf32>
    %cst_218 = arith.constant 1.000000e+00 : f32
    %384 = vector.broadcast %cst_218 : f32 to vector<32x128xf32>
    %385 = arith.subf %384, %383 : vector<32x128xf32>
    %386 = vector.broadcast %335 : f32 to vector<32x128xf32>
    %387 = arith.mulf %386, %383 : vector<32x128xf32>
    %388 = arith.mulf %316, %385 : vector<32x128xf32>
    %389 = arith.addf %387, %388 : vector<32x128xf32>
    %390 = vector.broadcast %336 : f32 to vector<32x128xf32>
    %391 = arith.mulf %390, %383 : vector<32x128xf32>
    %392 = arith.mulf %320, %385 : vector<32x128xf32>
    %393 = arith.addf %391, %392 : vector<32x128xf32>
    %394 = vector.broadcast %337 : f32 to vector<32x128xf32>
    %395 = arith.mulf %394, %383 : vector<32x128xf32>
    %396 = arith.mulf %324, %385 : vector<32x128xf32>
    %397 = arith.addf %395, %396 : vector<32x128xf32>
    %398 = arith.mulf %326, %385 : vector<32x128xf32>
    %399 = arith.addf %383, %398 : vector<32x128xf32>
    %c1_219 = arith.constant 1 : index
    %c2_220 = arith.constant 2 : index
    %c0_221 = arith.constant 0 : index
    %400 = memref.load %arg1[%c1_219, %c2_220, %c0_221] : memref<2x3x11xf32, #tpu.memory_space<smem>>
    %c1_222 = arith.constant 1 : index
    %c2_223 = arith.constant 2 : index
    %c1_224 = arith.constant 1 : index
    %401 = memref.load %arg1[%c1_222, %c2_223, %c1_224] : memref<2x3x11xf32, #tpu.memory_space<smem>>
    %c1_225 = arith.constant 1 : index
    %c2_226 = arith.constant 2 : index
    %c2_227 = arith.constant 2 : index
    %402 = memref.load %arg1[%c1_225, %c2_226, %c2_227] : memref<2x3x11xf32, #tpu.memory_space<smem>>
    %c1_228 = arith.constant 1 : index
    %c2_229 = arith.constant 2 : index
    %c3_230 = arith.constant 3 : index
    %403 = memref.load %arg1[%c1_228, %c2_229, %c3_230] : memref<2x3x11xf32, #tpu.memory_space<smem>>
    %c1_231 = arith.constant 1 : index
    %c2_232 = arith.constant 2 : index
    %c4_233 = arith.constant 4 : index
    %404 = memref.load %arg1[%c1_231, %c2_232, %c4_233] : memref<2x3x11xf32, #tpu.memory_space<smem>>
    %c1_234 = arith.constant 1 : index
    %c2_235 = arith.constant 2 : index
    %c5_236 = arith.constant 5 : index
    %405 = memref.load %arg1[%c1_234, %c2_235, %c5_236] : memref<2x3x11xf32, #tpu.memory_space<smem>>
    %c1_237 = arith.constant 1 : index
    %c2_238 = arith.constant 2 : index
    %c6_239 = arith.constant 6 : index
    %406 = memref.load %arg1[%c1_237, %c2_238, %c6_239] : memref<2x3x11xf32, #tpu.memory_space<smem>>
    %c1_240 = arith.constant 1 : index
    %c2_241 = arith.constant 2 : index
    %c7_242 = arith.constant 7 : index
    %407 = memref.load %arg1[%c1_240, %c2_241, %c7_242] : memref<2x3x11xf32, #tpu.memory_space<smem>>
    %c1_243 = arith.constant 1 : index
    %c2_244 = arith.constant 2 : index
    %c8_245 = arith.constant 8 : index
    %408 = memref.load %arg1[%c1_243, %c2_244, %c8_245] : memref<2x3x11xf32, #tpu.memory_space<smem>>
    %c1_246 = arith.constant 1 : index
    %c2_247 = arith.constant 2 : index
    %c9_248 = arith.constant 9 : index
    %409 = memref.load %arg1[%c1_246, %c2_247, %c9_248] : memref<2x3x11xf32, #tpu.memory_space<smem>>
    %c1_249 = arith.constant 1 : index
    %c2_250 = arith.constant 2 : index
    %c10_251 = arith.constant 10 : index
    %410 = memref.load %arg1[%c1_249, %c2_250, %c10_251] : memref<2x3x11xf32, #tpu.memory_space<smem>>
    %411 = vector.broadcast %401 : f32 to vector<32x128xf32>
    %412 = arith.subf %11, %411 : vector<32x128xf32>
    %413 = vector.broadcast %402 : f32 to vector<32x128xf32>
    %414 = arith.subf %14, %413 : vector<32x128xf32>
    %415 = vector.broadcast %405 : f32 to vector<32x128xf32>
    %416 = arith.mulf %412, %415 : vector<32x128xf32>
    %417 = vector.broadcast %406 : f32 to vector<32x128xf32>
    %418 = arith.mulf %414, %417 : vector<32x128xf32>
    %419 = arith.subf %416, %418 : vector<32x128xf32>
    %420 = vector.broadcast %406 : f32 to vector<32x128xf32>
    %421 = arith.mulf %412, %420 : vector<32x128xf32>
    %422 = vector.broadcast %405 : f32 to vector<32x128xf32>
    %423 = arith.mulf %414, %422 : vector<32x128xf32>
    %424 = arith.addf %421, %423 : vector<32x128xf32>
    %425 = vector.broadcast %403 : f32 to vector<32x128xf32>
    %426 = arith.mulf %419, %425 : vector<32x128xf32>
    %427 = vector.broadcast %404 : f32 to vector<32x128xf32>
    %428 = arith.mulf %424, %427 : vector<32x128xf32>
    %429 = arith.mulf %426, %426 : vector<32x128xf32>
    %430 = arith.mulf %428, %428 : vector<32x128xf32>
    %431 = arith.addf %429, %430 : vector<32x128xf32>
    %cst_252 = arith.constant 5.000000e-01 : f32
    %432 = vector.broadcast %cst_252 : f32 to vector<32x128xf32>
    %433 = arith.mulf %432, %431 : vector<32x128xf32>
    %434 = arith.mulf %429, %430 : vector<32x128xf32>
    %435 = vector.broadcast %407 : f32 to vector<32x128xf32>
    %436 = arith.mulf %434, %435 : vector<32x128xf32>
    %437 = arith.mulf %433, %433 : vector<32x128xf32>
    %438 = arith.subf %437, %436 : vector<32x128xf32>
    %cst_253 = arith.constant 9.99999993E-9 : f32
    %439 = vector.broadcast %cst_253 : f32 to vector<32x128xf32>
    %440 = arith.addf %438, %439 : vector<32x128xf32>
    %441 = math.sqrt %440 : vector<32x128xf32>
    %442 = arith.addf %433, %441 : vector<32x128xf32>
    %cst_254 = arith.constant 9.99999993E-9 : f32
    %443 = vector.broadcast %cst_254 : f32 to vector<32x128xf32>
    %444 = arith.addf %442, %443 : vector<32x128xf32>
    %445 = math.sqrt %444 : vector<32x128xf32>
    %cst_255 = arith.constant 1.000000e+00 : f32
    %446 = vector.broadcast %cst_255 : f32 to vector<32x128xf32>
    %447 = arith.subf %446, %445 : vector<32x128xf32>
    %448 = vector.broadcast %400 : f32 to vector<32x128xf32>
    %449 = arith.mulf %448, %447 : vector<32x128xf32>
    %cst_256 = arith.constant 5.000000e-01 : f32
    %450 = vector.broadcast %cst_256 : f32 to vector<32x128xf32>
    %451 = arith.mulf %450, %449 : vector<32x128xf32>
    %452 = math.tanh %451 : vector<32x128xf32>
    %cst_257 = arith.constant 5.000000e-01 : f32
    %453 = vector.broadcast %cst_257 : f32 to vector<32x128xf32>
    %454 = arith.mulf %453, %452 : vector<32x128xf32>
    %cst_258 = arith.constant 5.000000e-01 : f32
    %455 = vector.broadcast %cst_258 : f32 to vector<32x128xf32>
    %456 = arith.addf %454, %455 : vector<32x128xf32>
    %cst_259 = arith.constant 1.000000e+00 : f32
    %457 = vector.broadcast %cst_259 : f32 to vector<32x128xf32>
    %458 = arith.subf %457, %456 : vector<32x128xf32>
    %459 = vector.broadcast %408 : f32 to vector<32x128xf32>
    %460 = arith.mulf %459, %456 : vector<32x128xf32>
    %461 = arith.mulf %389, %458 : vector<32x128xf32>
    %462 = arith.addf %460, %461 : vector<32x128xf32>
    %463 = vector.broadcast %409 : f32 to vector<32x128xf32>
    %464 = arith.mulf %463, %456 : vector<32x128xf32>
    %465 = arith.mulf %393, %458 : vector<32x128xf32>
    %466 = arith.addf %464, %465 : vector<32x128xf32>
    %467 = vector.broadcast %410 : f32 to vector<32x128xf32>
    %468 = arith.mulf %467, %456 : vector<32x128xf32>
    %469 = arith.mulf %397, %458 : vector<32x128xf32>
    %470 = arith.addf %468, %469 : vector<32x128xf32>
    %471 = arith.mulf %399, %458 : vector<32x128xf32>
    %472 = arith.addf %456, %471 : vector<32x128xf32>
    %c1_260 = arith.constant 1 : index
    %c0_261 = arith.constant 0 : index
    %c0_262 = arith.constant 0 : index
    %c0_263 = arith.constant 0 : index
    %473 = vector.load %arg2[%c1_260, %c0_261, %c0_262, %c0_263] : memref<2x4x32x128xf32, #tpu.memory_space<vmem>>, vector<1x1x32x128xf32>
    %474 = vector.shape_cast %473 : vector<1x1x32x128xf32> to vector<32x128xf32>
    %475 = vector.shape_cast %462 : vector<32x128xf32> to vector<1x1x32x128xf32>
    tpu.vector_store %arg2[%c1_260, %c0_261, %c0_262, %c0_263], %475 {strides = array<i32>} : memref<2x4x32x128xf32, #tpu.memory_space<vmem>>, vector<1x1x32x128xf32>,
    %c1_264 = arith.constant 1 : index
    %c1_265 = arith.constant 1 : index
    %c0_266 = arith.constant 0 : index
    %c0_267 = arith.constant 0 : index
    %476 = vector.load %arg2[%c1_264, %c1_265, %c0_266, %c0_267] : memref<2x4x32x128xf32, #tpu.memory_space<vmem>>, vector<1x1x32x128xf32>
    %477 = vector.shape_cast %476 : vector<1x1x32x128xf32> to vector<32x128xf32>
    %478 = vector.shape_cast %466 : vector<32x128xf32> to vector<1x1x32x128xf32>
    tpu.vector_store %arg2[%c1_264, %c1_265, %c0_266, %c0_267], %478 {strides = array<i32>} : memref<2x4x32x128xf32, #tpu.memory_space<vmem>>, vector<1x1x32x128xf32>,
    %c1_268 = arith.constant 1 : index
    %c2_269 = arith.constant 2 : index
    %c0_270 = arith.constant 0 : index
    %c0_271 = arith.constant 0 : index
    %479 = vector.load %arg2[%c1_268, %c2_269, %c0_270, %c0_271] : memref<2x4x32x128xf32, #tpu.memory_space<vmem>>, vector<1x1x32x128xf32>
    %480 = vector.shape_cast %479 : vector<1x1x32x128xf32> to vector<32x128xf32>
    %481 = vector.shape_cast %470 : vector<32x128xf32> to vector<1x1x32x128xf32>
    tpu.vector_store %arg2[%c1_268, %c2_269, %c0_270, %c0_271], %481 {strides = array<i32>} : memref<2x4x32x128xf32, #tpu.memory_space<vmem>>, vector<1x1x32x128xf32>,
    %c1_272 = arith.constant 1 : index
    %c3_273 = arith.constant 3 : index
    %c0_274 = arith.constant 0 : index
    %c0_275 = arith.constant 0 : index
    %482 = vector.load %arg2[%c1_272, %c3_273, %c0_274, %c0_275] : memref<2x4x32x128xf32, #tpu.memory_space<vmem>>, vector<1x1x32x128xf32>
    %483 = vector.shape_cast %482 : vector<1x1x32x128xf32> to vector<32x128xf32>
    %484 = vector.shape_cast %472 : vector<32x128xf32> to vector<1x1x32x128xf32>
    tpu.vector_store %arg2[%c1_272, %c3_273, %c0_274, %c0_275], %484 {strides = array<i32>} : memref<2x4x32x128xf32, #tpu.memory_space<vmem>>, vector<1x1x32x128xf32>,
    return
  }
  func.func @transform_0(%arg0: i32) -> (i32, i32, i32) {
    %c0_i32 = arith.constant 0 : i32
    %c0_i32_0 = arith.constant 0 : i32
    %c0_i32_1 = arith.constant 0 : i32
    return %arg0, %c0_i32, %c0_i32_0 : i32, i32, i32
  }
  func.func @transform_1(%arg0: i32) -> (i32, i32, i32, i32) {
    %c0_i32 = arith.constant 0 : i32
    %c0_i32_0 = arith.constant 0 : i32
    %c0_i32_1 = arith.constant 0 : i32
    %c0_i32_2 = arith.constant 0 : i32
    return %arg0, %c0_i32, %c0_i32_0, %c0_i32_1 : i32, i32, i32, i32
  }
}

</mosaic_0001>

<llo_original>
// kernel: tpu_custom_call.1
$region0: #{tpu_custom_call.1}
  #allocation0 [shape = 'u32[]', space=smem, size = 0x4, offset = 0x4, fixed_abs, tag = 'smem constant byte address 0x4 - core index']
  #allocation1 [shape = 'u32[144,128]{1,0:T(1,128)}', space=vmem, size = 0x12000, scoped, tag = 'internal scratch']
  %s0 = inlined_call_operand.vmem [shape: f32[2,3,11], index: 0, kind: input, shape index: {}]
  %s1 = inlined_call_operand.hbm [shape: f32[2,4,32,128], index: 1, kind: output, shape index: {}]
  %s2 = sld [smem:[#allocation0]]
  $region18: #{tpu_custom_call.1} parent=0
    _
  %s4 = ssub.s32 1, %s2
  %s5 = scalar_select 0, %s4, %s2
  $region1: #{tpu_custom_call.1} parent=0
    #allocation2 [shape = 'u8[4096]{0}', space=smem, size = 0x1000, scoped, tag = 'input window, operand 0, single buffered']
    #allocation3 [shape = 's32[1]{0}', space=sflag, size = 0x4, scoped, tag = 'scoped memory for tpu_custom_call.1']
    #allocation4 [shape = 's32[1]{0}', space=sflag, size = 0x4, scoped, tag = 'scoped memory for tpu_custom_call.1']
    #allocation5 [shape = 'u8[131072]{0}', space=vmem, size = 0x20000, scoped, tag = 'output window, operand 0, single buffered']
    %6 = vsyncpa [#allocation4], 0
    %7 = vsyncpa [#allocation3], 0
    // Predicated region
    $region2: #{tpu_custom_call.1} parent=1 // pred_check
      _
    $region3: #{tpu_custom_call.1} parent=1 // pred_check_branch
      %9 = sbr.rel (0) target = $region5
    $region4: #{tpu_custom_call.1} parent=1 // pred_region
      %s11 = ssub.s32 128, 128
      %12 = vsyncadd [#allocation4], %s11
      %s13 = sshll.u32 %s0, 4
      %s14 = int_to_ptr.vmem [resolvable:$true] %s13
      %19 = dma.vmem_to_smem %s14, 128, [#allocation2], [#allocation4], 64, 64, 4
    $region5: #{tpu_custom_call.1} parent=1 // pred_fallthru
      _
    // Predicated region
    $region6: #{tpu_custom_call.1} parent=1 // pred_check
      _
    $region7: #{tpu_custom_call.1} parent=1 // pred_check_branch
      %21 = sbr.rel (0) target = $region9
    $region8: #{tpu_custom_call.1} parent=1 // pred_region
      %22 = dma.done [#allocation4], 128
    $region9: #{tpu_custom_call.1} parent=1 // pred_fallthru
      _
    %23 = sfence
    %v24 = vlaneseq
    %v25 = vshrl.u32 %v24, 7
    %v26 = vadd.s32 %v25, 8
    %v27 = vadd.s32 %v25, 16
    %v28 = vadd.s32 %v25, 24
    %v29 = vmul.u32 %v25, 128
    %v30 = vmul.u32 %v26, 128
    %v31 = vmul.u32 %v27, 128
    %v32 = vmul.u32 %v28, 128
    %v33 = vlaneseq
    %v34 = vand.u32 %v33, 127
    %v35 = vadd.s32 %v29, %v34
    %v36 = vadd.s32 %v30, %v34
    %v37 = vadd.s32 %v31, %v34
    %v38 = vadd.s32 %v32, %v34
    %v39 = vshra.s32 %v35, 6
    %v40 = vshra.s32 %v36, 6
    %v41 = vshra.s32 %v37, 6
    %v42 = vshra.s32 %v38, 6
    %v43 = vand.u32 %v35, 63
    %v44 = vand.u32 %v36, 63
    %v45 = vand.u32 %v37, 63
    %v46 = vand.u32 %v38, 63
    %v47 = vcvt.s32.f32 %v39
    %v48 = vcvt.s32.f32 %v40
    %v49 = vcvt.s32.f32 %v41
    %v50 = vcvt.s32.f32 %v42
    %v51 = vmul.f32 %v47, 0.015873017
    %v52 = vmul.f32 %v48, 0.015873017
    %v53 = vmul.f32 %v49, 0.015873017
    %v54 = vmul.f32 %v50, 0.015873017
    %v55 = vcvt.s32.f32 %v43
    %v56 = vcvt.s32.f32 %v44
    %v57 = vcvt.s32.f32 %v45
    %v58 = vcvt.s32.f32 %v46
    %v59 = vmul.f32 %v55, 0.015873017
    %v60 = vmul.f32 %v56, 0.015873017
    %v61 = vmul.f32 %v57, 0.015873017
    %v62 = vmul.f32 %v58, 0.015873017
    %s63 = sld [smem:[#allocation2]]
    %s64 = sld [smem:[#allocation2 + $0x1]]
    %s65 = sld [smem:[#allocation2 + $0x2]]
    %s66 = sld [smem:[#allocation2 + $0x3]]
    %s67 = sld [smem:[#allocation2 + $0x4]]
    %s68 = sld [smem:[#allocation2 + $0x5]]
    %s69 = sld [smem:[#allocation2 + $0x6]]
    %s70 = sld [smem:[#allocation2 + $0x7]]
    %s71 = sld [smem:[#allocation2 + $0x8]]
    %s72 = sld [smem:[#allocation2 + $0x9]]
    %s73 = sld [smem:[#allocation2 + $0xa]]
    %v74 = vstv %s64
    %v75 = vsub.f32 %v51, %v74
    %v76 = vsub.f32 %v52, %v74
    %v77 = vsub.f32 %v53, %v74
    %v78 = vsub.f32 %v54, %v74
    %v79 = vstv %s65
    %v80 = vsub.f32 %v59, %v79
    %v81 = vsub.f32 %v60, %v79
    %v82 = vsub.f32 %v61, %v79
    %v83 = vsub.f32 %v62, %v79
    %v84 = vstv %s68
    %v85 = vmul.f32 %v75, %v84
    %v86 = vmul.f32 %v76, %v84
    %v87 = vmul.f32 %v77, %v84
    %v88 = vmul.f32 %v78, %v84
    %v89 = vstv %s69
    %v90 = vmul.f32 %v80, %v89
    %v91 = vmul.f32 %v81, %v89
    %v92 = vmul.f32 %v82, %v89
    %v93 = vmul.f32 %v83, %v89
    %v94 = vsub.f32 %v85, %v90
    %v95 = vsub.f32 %v86, %v91
    %v96 = vsub.f32 %v87, %v92
    %v97 = vsub.f32 %v88, %v93
    %v98 = vmul.f32 %v75, %v89
    %v99 = vmul.f32 %v76, %v89
    %v100 = vmul.f32 %v77, %v89
    %v101 = vmul.f32 %v78, %v89
    %v102 = vmul.f32 %v80, %v84
    %v103 = vmul.f32 %v81, %v84
    %v104 = vmul.f32 %v82, %v84
    %v105 = vmul.f32 %v83, %v84
    %v106 = vadd.f32 %v98, %v102
    %v107 = vadd.f32 %v99, %v103
    %v108 = vadd.f32 %v100, %v104
    %v109 = vadd.f32 %v101, %v105
    %v110 = vstv %s66
    %v111 = vmul.f32 %v94, %v110
    %v112 = vmul.f32 %v95, %v110
    %v113 = vmul.f32 %v96, %v110
    %v114 = vmul.f32 %v97, %v110
    %v115 = vstv %s67
    %v116 = vmul.f32 %v106, %v115
    %v117 = vmul.f32 %v107, %v115
    %v118 = vmul.f32 %v108, %v115
    %v119 = vmul.f32 %v109, %v115
    %v120 = vmul.f32 %v111, %v111
    %v121 = vmul.f32 %v112, %v112
    %v122 = vmul.f32 %v113, %v113
    %v123 = vmul.f32 %v114, %v114
    %v124 = vmul.f32 %v116, %v116
    %v125 = vmul.f32 %v117, %v117
    %v126 = vmul.f32 %v118, %v118
    %v127 = vmul.f32 %v119, %v119
    %v128 = vadd.f32 %v120, %v124
    %v129 = vadd.f32 %v121, %v125
    %v130 = vadd.f32 %v122, %v126
    %v131 = vadd.f32 %v123, %v127
    %v132 = vmul.f32 %v128, 0.5
    %v133 = vmul.f32 %v129, 0.5
    %v134 = vmul.f32 %v130, 0.5
    %v135 = vmul.f32 %v131, 0.5
    %v136 = vmul.f32 %v120, %v124
    %v137 = vmul.f32 %v121, %v125
    %v138 = vmul.f32 %v122, %v126
    %v139 = vmul.f32 %v123, %v127
    %v140 = vstv %s70
    %v141 = vmul.f32 %v136, %v140
    %v142 = vmul.f32 %v137, %v140
    %v143 = vmul.f32 %v138, %v140
    %v144 = vmul.f32 %v139, %v140
    %v145 = vmul.f32 %v132, %v132
    %v146 = vmul.f32 %v133, %v133
    %v147 = vmul.f32 %v134, %v134
    %v148 = vmul.f32 %v135, %v135
    %v149 = vsub.f32 %v145, %v141
    %v150 = vsub.f32 %v146, %v142
    %v151 = vsub.f32 %v147, %v143
    %v152 = vsub.f32 %v148, %v144
    %v153 = vadd.f32 %v149, 1e-08
    %v154 = vadd.f32 %v150, 1e-08
    %v155 = vadd.f32 %v151, 1e-08
    %v156 = vadd.f32 %v152, 1e-08
    %v157 = vrsqrt.pop %v153
    %v158 = vmul.f32 %v153, %v157
    %vm159 = vcmp.eq.f32.partialorder %v153, inf
    %v160 = vsel %vm159, %v153, %v158
    %vm161 = vcmp.eq.f32.partialorder %v153, 0.0
    %v162 = vand.u32 %v153, 2147483648
    %v163 = vsel %vm161, %v162, %v160
    %v164 = vrsqrt.pop %v154
    %v165 = vmul.f32 %v154, %v164
    %vm166 = vcmp.eq.f32.partialorder %v154, inf
    %v167 = vsel %vm166, %v154, %v165
    %vm168 = vcmp.eq.f32.partialorder %v154, 0.0
    %v169 = vand.u32 %v154, 2147483648
    %v170 = vsel %vm168, %v169, %v167
    %v171 = vrsqrt.pop %v155
    %v172 = vmul.f32 %v155, %v171
    %vm173 = vcmp.eq.f32.partialorder %v155, inf
    %v174 = vsel %vm173, %v155, %v172
    %vm175 = vcmp.eq.f32.partialorder %v155, 0.0
    %v176 = vand.u32 %v155, 2147483648
    %v177 = vsel %vm175, %v176, %v174
    %v178 = vrsqrt.pop %v156
    %v179 = vmul.f32 %v156, %v178
    %vm180 = vcmp.eq.f32.partialorder %v156, inf
    %v181 = vsel %vm180, %v156, %v179
    %vm182 = vcmp.eq.f32.partialorder %v156, 0.0
    %v183 = vand.u32 %v156, 2147483648
    %v184 = vsel %vm182, %v183, %v181
    %v185 = vadd.f32 %v132, %v163
    %v186 = vadd.f32 %v133, %v170
    %v187 = vadd.f32 %v134, %v177
    %v188 = vadd.f32 %v135, %v184
    %v189 = vadd.f32 %v185, 1e-08
    %v190 = vadd.f32 %v186, 1e-08
    %v191 = vadd.f32 %v187, 1e-08
    %v192 = vadd.f32 %v188, 1e-08
    %v193 = vrsqrt.pop %v189
    %v194 = vmul.f32 %v189, %v193
    %vm195 = vcmp.eq.f32.partialorder %v189, inf
    %v196 = vsel %vm195, %v189, %v194
    %vm197 = vcmp.eq.f32.partialorder %v189, 0.0
    %v198 = vand.u32 %v189, 2147483648
    %v199 = vsel %vm197, %v198, %v196
    %v200 = vrsqrt.pop %v190
    %v201 = vmul.f32 %v190, %v200
    %vm202 = vcmp.eq.f32.partialorder %v190, inf
    %v203 = vsel %vm202, %v190, %v201
    %vm204 = vcmp.eq.f32.partialorder %v190, 0.0
    %v205 = vand.u32 %v190, 2147483648
    %v206 = vsel %vm204, %v205, %v203
    %v207 = vrsqrt.pop %v191
    %v208 = vmul.f32 %v191, %v207
    %vm209 = vcmp.eq.f32.partialorder %v191, inf
    %v210 = vsel %vm209, %v191, %v208
    %vm211 = vcmp.eq.f32.partialorder %v191, 0.0
    %v212 = vand.u32 %v191, 2147483648
    %v213 = vsel %vm211, %v212, %v210
    %v214 = vrsqrt.pop %v192
    %v215 = vmul.f32 %v192, %v214
    %vm216 = vcmp.eq.f32.partialorder %v192, inf
    %v217 = vsel %vm216, %v192, %v215
    %vm218 = vcmp.eq.f32.partialorder %v192, 0.0
    %v219 = vand.u32 %v192, 2147483648
    %v220 = vsel %vm218, %v219, %v217
    %v221 = vsub.f32 1.0, %v199
    %v222 = vsub.f32 1.0, %v206
    %v223 = vsub.f32 1.0, %v213
    %v224 = vsub.f32 1.0, %v220
    %v225 = vstv %s63
    %v226 = vmul.f32 %v225, %v221
    %v227 = vmul.f32 %v225, %v222
    %v228 = vmul.f32 %v225, %v223
    %v229 = vmul.f32 %v225, %v224
    %v230 = vmul.f32 %v226, 0.5
    %v231 = vmul.f32 %v227, 0.5
    %v232 = vmul.f32 %v228, 0.5
    %v233 = vmul.f32 %v229, 0.5
    %v234 = vtanh.pop %v230
    %v235 = vtanh.pop %v231
    %v236 = vtanh.pop %v232
    %v237 = vtanh.pop %v233
    %v238 = vmul.f32 %v234, 0.5
    %v239 = vmul.f32 %v235, 0.5
    %v240 = vmul.f32 %v236, 0.5
    %v241 = vmul.f32 %v237, 0.5
    %v242 = vadd.f32 %v238, 0.5
    %v243 = vadd.f32 %v239, 0.5
    %v244 = vadd.f32 %v240, 0.5
    %v245 = vadd.f32 %v241, 0.5
    %v246 = vsub.f32 1.0, %v242
    %v247 = vsub.f32 1.0, %v243
    %v248 = vsub.f32 1.0, %v244
    %v249 = vsub.f32 1.0, %v245
    %v250 = vstv %s71
    %v251 = vmul.f32 %v250, %v242
    %v252 = vmul.f32 %v250, %v243
    %v253 = vmul.f32 %v250, %v244
    %v254 = vmul.f32 %v250, %v245
    %v255 = vmul.f32 %v246, 0.0
    %v256 = vmul.f32 %v247, 0.0
    %v257 = vmul.f32 %v248, 0.0
    %v258 = vmul.f32 %v249, 0.0
    %v259 = vadd.f32 %v251, %v255
    %v260 = vadd.f32 %v252, %v256
    %v261 = vadd.f32 %v253, %v257
    %v262 = vadd.f32 %v254, %v258
    %v263 = vstv %s72
    %v264 = vmul.f32 %v263, %v242
    %v265 = vmul.f32 %v263, %v243
    %v266 = vmul.f32 %v263, %v244
    %v267 = vmul.f32 %v263, %v245
    %v268 = vadd.f32 %v264, %v255
    %v269 = vadd.f32 %v265, %v256
    %v270 = vadd.f32 %v266, %v257
    %v271 = vadd.f32 %v267, %v258
    %v272 = vstv %s73
    %v273 = vmul.f32 %v272, %v242
    %v274 = vmul.f32 %v272, %v243
    %v275 = vmul.f32 %v272, %v244
    %v276 = vmul.f32 %v272, %v245
    %v277 = vadd.f32 %v273, %v255
    %v278 = vadd.f32 %v274, %v256
    %v279 = vadd.f32 %v275, %v257
    %v280 = vadd.f32 %v276, %v258
    %v281 = vadd.f32 %v242, %v255
    %v282 = vadd.f32 %v243, %v256
    %v283 = vadd.f32 %v244, %v257
    %v284 = vadd.f32 %v245, %v258
    %s285 = sld [smem:[#allocation2 + $0x80]]
    %s286 = sld [smem:[#allocation2 + $0x81]]
    %s287 = sld [smem:[#allocation2 + $0x82]]
    %s288 = sld [smem:[#allocation2 + $0x83]]
    %s289 = sld [smem:[#allocation2 + $0x84]]
    %s290 = sld [smem:[#allocation2 + $0x85]]
    %s291 = sld [smem:[#allocation2 + $0x86]]
    %s292 = sld [smem:[#allocation2 + $0x87]]
    %s293 = sld [smem:[#allocation2 + $0x88]]
    %s294 = sld [smem:[#allocation2 + $0x89]]
    %s295 = sld [smem:[#allocation2 + $0x8a]]
    %v296 = vstv %s286
    %v297 = vsub.f32 %v51, %v296
    %v298 = vsub.f32 %v52, %v296
    %v299 = vsub.f32 %v53, %v296
    %v300 = vsub.f32 %v54, %v296
    %v301 = vstv %s287
    %v302 = vsub.f32 %v59, %v301
    %v303 = vsub.f32 %v60, %v301
    %v304 = vsub.f32 %v61, %v301
    %v305 = vsub.f32 %v62, %v301
    %v306 = vstv %s290
    %v307 = vmul.f32 %v297, %v306
    %v308 = vmul.f32 %v298, %v306
    %v309 = vmul.f32 %v299, %v306
    %v310 = vmul.f32 %v300, %v306
    %v311 = vstv %s291
    %v312 = vmul.f32 %v302, %v311
    %v313 = vmul.f32 %v303, %v311
    %v314 = vmul.f32 %v304, %v311
    %v315 = vmul.f32 %v305, %v311
    %v316 = vsub.f32 %v307, %v312
    %v317 = vsub.f32 %v308, %v313
    %v318 = vsub.f32 %v309, %v314
    %v319 = vsub.f32 %v310, %v315
    %v320 = vmul.f32 %v297, %v311
    %v321 = vmul.f32 %v298, %v311
    %v322 = vmul.f32 %v299, %v311
    %v323 = vmul.f32 %v300, %v311
    %v324 = vmul.f32 %v302, %v306
    %v325 = vmul.f32 %v303, %v306
    %v326 = vmul.f32 %v304, %v306
    %v327 = vmul.f32 %v305, %v306
    %v328 = vadd.f32 %v320, %v324
    %v329 = vadd.f32 %v321, %v325
    %v330 = vadd.f32 %v322, %v326
    %v331 = vadd.f32 %v323, %v327
    %v332 = vstv %s288
    %v333 = vmul.f32 %v316, %v332
    %v334 = vmul.f32 %v317, %v332
    %v335 = vmul.f32 %v318, %v332
    %v336 = vmul.f32 %v319, %v332
    %v337 = vstv %s289
    %v338 = vmul.f32 %v328, %v337
    %v339 = vmul.f32 %v329, %v337
    %v340 = vmul.f32 %v330, %v337
    %v341 = vmul.f32 %v331, %v337
    %v342 = vmul.f32 %v333, %v333
    %v343 = vmul.f32 %v334, %v334
    %v344 = vmul.f32 %v335, %v335
    %v345 = vmul.f32 %v336, %v336
    %v346 = vmul.f32 %v338, %v338
    %v347 = vmul.f32 %v339, %v339
    %v348 = vmul.f32 %v340, %v340
    %v349 = vmul.f32 %v341, %v341
    %v350 = vadd.f32 %v342, %v346
    %v351 = vadd.f32 %v343, %v347
    %v352 = vadd.f32 %v344, %v348
    %v353 = vadd.f32 %v345, %v349
    %v354 = vmul.f32 %v350, 0.5
    %v355 = vmul.f32 %v351, 0.5
    %v356 = vmul.f32 %v352, 0.5
    %v357 = vmul.f32 %v353, 0.5
    %v358 = vmul.f32 %v342, %v346
    %v359 = vmul.f32 %v343, %v347
    %v360 = vmul.f32 %v344, %v348
    %v361 = vmul.f32 %v345, %v349
    %v362 = vstv %s292
    %v363 = vmul.f32 %v358, %v362
    %v364 = vmul.f32 %v359, %v362
    %v365 = vmul.f32 %v360, %v362
    %v366 = vmul.f32 %v361, %v362
    %v367 = vmul.f32 %v354, %v354
    %v368 = vmul.f32 %v355, %v355
    %v369 = vmul.f32 %v356, %v356
    %v370 = vmul.f32 %v357, %v357
    %v371 = vsub.f32 %v367, %v363
    %v372 = vsub.f32 %v368, %v364
    %v373 = vsub.f32 %v369, %v365
    %v374 = vsub.f32 %v370, %v366
    %v375 = vadd.f32 %v371, 1e-08
    %v376 = vadd.f32 %v372, 1e-08
    %v377 = vadd.f32 %v373, 1e-08
    %v378 = vadd.f32 %v374, 1e-08
    %v379 = vrsqrt.pop %v375
    %v380 = vmul.f32 %v375, %v379
    %vm381 = vcmp.eq.f32.partialorder %v375, inf
    %v382 = vsel %vm381, %v375, %v380
    %vm383 = vcmp.eq.f32.partialorder %v375, 0.0
    %v384 = vand.u32 %v375, 2147483648
    %v385 = vsel %vm383, %v384, %v382
    %v386 = vrsqrt.pop %v376
    %v387 = vmul.f32 %v376, %v386
    %vm388 = vcmp.eq.f32.partialorder %v376, inf
    %v389 = vsel %vm388, %v376, %v387
    %vm390 = vcmp.eq.f32.partialorder %v376, 0.0
    %v391 = vand.u32 %v376, 2147483648
    %v392 = vsel %vm390, %v391, %v389
    %v393 = vrsqrt.pop %v377
    %v394 = vmul.f32 %v377, %v393
    %vm395 = vcmp.eq.f32.partialorder %v377, inf
    %v396 = vsel %vm395, %v377, %v394
    %vm397 = vcmp.eq.f32.partialorder %v377, 0.0
    %v398 = vand.u32 %v377, 2147483648
    %v399 = vsel %vm397, %v398, %v396
    %v400 = vrsqrt.pop %v378
    %v401 = vmul.f32 %v378, %v400
    %vm402 = vcmp.eq.f32.partialorder %v378, inf
    %v403 = vsel %vm402, %v378, %v401
    %vm404 = vcmp.eq.f32.partialorder %v378, 0.0
    %v405 = vand.u32 %v378, 2147483648
    %v406 = vsel %vm404, %v405, %v403
    %v407 = vadd.f32 %v354, %v385
    %v408 = vadd.f32 %v355, %v392
    %v409 = vadd.f32 %v356, %v399
    %v410 = vadd.f32 %v357, %v406
    %v411 = vadd.f32 %v407, 1e-08
    %v412 = vadd.f32 %v408, 1e-08
    %v413 = vadd.f32 %v409, 1e-08
    %v414 = vadd.f32 %v410, 1e-08
    %v415 = vrsqrt.pop %v411
    %v416 = vmul.f32 %v411, %v415
    %vm417 = vcmp.eq.f32.partialorder %v411, inf
    %v418 = vsel %vm417, %v411, %v416
    %vm419 = vcmp.eq.f32.partialorder %v411, 0.0
    %v420 = vand.u32 %v411, 2147483648
    %v421 = vsel %vm419, %v420, %v418
    %v422 = vrsqrt.pop %v412
    %v423 = vmul.f32 %v412, %v422
    %vm424 = vcmp.eq.f32.partialorder %v412, inf
    %v425 = vsel %vm424, %v412, %v423
    %vm426 = vcmp.eq.f32.partialorder %v412, 0.0
    %v427 = vand.u32 %v412, 2147483648
    %v428 = vsel %vm426, %v427, %v425
    %v429 = vrsqrt.pop %v413
    %v430 = vmul.f32 %v413, %v429
    %vm431 = vcmp.eq.f32.partialorder %v413, inf
    %v432 = vsel %vm431, %v413, %v430
    %vm433 = vcmp.eq.f32.partialorder %v413, 0.0
    %v434 = vand.u32 %v413, 2147483648
    %v435 = vsel %vm433, %v434, %v432
    %v436 = vrsqrt.pop %v414
    %v437 = vmul.f32 %v414, %v436
    %vm438 = vcmp.eq.f32.partialorder %v414, inf
    %v439 = vsel %vm438, %v414, %v437
    %vm440 = vcmp.eq.f32.partialorder %v414, 0.0
    %v441 = vand.u32 %v414, 2147483648
    %v442 = vsel %vm440, %v441, %v439
    %v443 = vsub.f32 1.0, %v421
    %v444 = vsub.f32 1.0, %v428
    %v445 = vsub.f32 1.0, %v435
    %v446 = vsub.f32 1.0, %v442
    %v447 = vstv %s285
    %v448 = vmul.f32 %v447, %v443
    %v449 = vmul.f32 %v447, %v444
    %v450 = vmul.f32 %v447, %v445
    %v451 = vmul.f32 %v447, %v446
    %v452 = vmul.f32 %v448, 0.5
    %v453 = vmul.f32 %v449, 0.5
    %v454 = vmul.f32 %v450, 0.5
    %v455 = vmul.f32 %v451, 0.5
    %v456 = vtanh.pop %v452
    %v457 = vtanh.pop %v453
    %v458 = vtanh.pop %v454
    %v459 = vtanh.pop %v455
    %v460 = vmul.f32 %v456, 0.5
    %v461 = vmul.f32 %v457, 0.5
    %v462 = vmul.f32 %v458, 0.5
    %v463 = vmul.f32 %v459, 0.5
    %v464 = vadd.f32 %v460, 0.5
    %v465 = vadd.f32 %v461, 0.5
    %v466 = vadd.f32 %v462, 0.5
    %v467 = vadd.f32 %v463, 0.5
    %v468 = vsub.f32 1.0, %v464
    %v469 = vsub.f32 1.0, %v465
    %v470 = vsub.f32 1.0, %v466
    %v471 = vsub.f32 1.0, %v467
    %v472 = vstv %s293
    %v473 = vmul.f32 %v472, %v464
    %v474 = vmul.f32 %v472, %v465
    %v475 = vmul.f32 %v472, %v466
    %v476 = vmul.f32 %v472, %v467
    %v477 = vmul.f32 %v259, %v468
    %v478 = vmul.f32 %v260, %v469
    %v479 = vmul.f32 %v261, %v470
    %v480 = vmul.f32 %v262, %v471
    %v481 = vadd.f32 %v473, %v477
    %v482 = vadd.f32 %v474, %v478
    %v483 = vadd.f32 %v475, %v479
    %v484 = vadd.f32 %v476, %v480
    %v485 = vstv %s294
    %v486 = vmul.f32 %v485, %v464
    %v487 = vmul.f32 %v485, %v465
    %v488 = vmul.f32 %v485, %v466
    %v489 = vmul.f32 %v485, %v467
    %v490 = vmul.f32 %v268, %v468
    %v491 = vmul.f32 %v269, %v469
    %v492 = vmul.f32 %v270, %v470
    %v493 = vmul.f32 %v271, %v471
    %v494 = vadd.f32 %v486, %v490
    %v495 = vadd.f32 %v487, %v491
    %v496 = vadd.f32 %v488, %v492
    %v497 = vadd.f32 %v489, %v493
    %v498 = vstv %s295
    %v499 = vmul.f32 %v498, %v464
    %v500 = vmul.f32 %v498, %v465
    %v501 = vmul.f32 %v498, %v466
    %v502 = vmul.f32 %v498, %v467
    %v503 = vmul.f32 %v277, %v468
    %v504 = vmul.f32 %v278, %v469
    %v505 = vmul.f32 %v279, %v470
    %v506 = vmul.f32 %v280, %v471
    %v507 = vadd.f32 %v499, %v503
    %v508 = vadd.f32 %v500, %v504
    %v509 = vadd.f32 %v501, %v505
    %v510 = vadd.f32 %v502, %v506
    %v511 = vmul.f32 %v281, %v468
    %v512 = vmul.f32 %v282, %v469
    %v513 = vmul.f32 %v283, %v470
    %v514 = vmul.f32 %v284, %v471
    %v515 = vadd.f32 %v464, %v511
    %v516 = vadd.f32 %v465, %v512
    %v517 = vadd.f32 %v466, %v513
    %v518 = vadd.f32 %v467, %v514
    %s519 = sld [smem:[#allocation2 + $0x100]]
    %s520 = sld [smem:[#allocation2 + $0x101]]
    %s521 = sld [smem:[#allocation2 + $0x102]]
    %s522 = sld [smem:[#allocation2 + $0x103]]
    %s523 = sld [smem:[#allocation2 + $0x104]]
    %s524 = sld [smem:[#allocation2 + $0x105]]
    %s525 = sld [smem:[#allocation2 + $0x106]]
    %s526 = sld [smem:[#allocation2 + $0x107]]
    %s527 = sld [smem:[#allocation2 + $0x108]]
    %s528 = sld [smem:[#allocation2 + $0x109]]
    %s529 = sld [smem:[#allocation2 + $0x10a]]
    %v530 = vstv %s520
    %v531 = vsub.f32 %v51, %v530
    %v532 = vsub.f32 %v52, %v530
    %v533 = vsub.f32 %v53, %v530
    %v534 = vsub.f32 %v54, %v530
    %v535 = vstv %s521
    %v536 = vsub.f32 %v59, %v535
    %v537 = vsub.f32 %v60, %v535
    %v538 = vsub.f32 %v61, %v535
    %v539 = vsub.f32 %v62, %v535
    %v540 = vstv %s524
    %v541 = vmul.f32 %v531, %v540
    %v542 = vmul.f32 %v532, %v540
    %v543 = vmul.f32 %v533, %v540
    %v544 = vmul.f32 %v534, %v540
    %v545 = vstv %s525
    %v546 = vmul.f32 %v536, %v545
    %v547 = vmul.f32 %v537, %v545
    %v548 = vmul.f32 %v538, %v545
    %v549 = vmul.f32 %v539, %v545
    %v550 = vsub.f32 %v541, %v546
    %v551 = vsub.f32 %v542, %v547
    %v552 = vsub.f32 %v543, %v548
    %v553 = vsub.f32 %v544, %v549
    %v554 = vmul.f32 %v531, %v545
    %v555 = vmul.f32 %v532, %v545
    %v556 = vmul.f32 %v533, %v545
    %v557 = vmul.f32 %v534, %v545
    %v558 = vmul.f32 %v536, %v540
    %v559 = vmul.f32 %v537, %v540
    %v560 = vmul.f32 %v538, %v540
    %v561 = vmul.f32 %v539, %v540
    %v562 = vadd.f32 %v554, %v558
    %v563 = vadd.f32 %v555, %v559
    %v564 = vadd.f32 %v556, %v560
    %v565 = vadd.f32 %v557, %v561
    %v566 = vstv %s522
    %v567 = vmul.f32 %v550, %v566
    %v568 = vmul.f32 %v551, %v566
    %v569 = vmul.f32 %v552, %v566
    %v570 = vmul.f32 %v553, %v566
    %v571 = vstv %s523
    %v572 = vmul.f32 %v562, %v571
    %v573 = vmul.f32 %v563, %v571
    %v574 = vmul.f32 %v564, %v571
    %v575 = vmul.f32 %v565, %v571
    %v576 = vmul.f32 %v567, %v567
    %v577 = vmul.f32 %v568, %v568
    %v578 = vmul.f32 %v569, %v569
    %v579 = vmul.f32 %v570, %v570
    %v580 = vmul.f32 %v572, %v572
    %v581 = vmul.f32 %v573, %v573
    %v582 = vmul.f32 %v574, %v574
    %v583 = vmul.f32 %v575, %v575
    %v584 = vadd.f32 %v576, %v580
    %v585 = vadd.f32 %v577, %v581
    %v586 = vadd.f32 %v578, %v582
    %v587 = vadd.f32 %v579, %v583
    %v588 = vmul.f32 %v584, 0.5
    %v589 = vmul.f32 %v585, 0.5
    %v590 = vmul.f32 %v586, 0.5
    %v591 = vmul.f32 %v587, 0.5
    %v592 = vmul.f32 %v576, %v580
    %v593 = vmul.f32 %v577, %v581
    %v594 = vmul.f32 %v578, %v582
    %v595 = vmul.f32 %v579, %v583
    %v596 = vstv %s526
    %v597 = vmul.f32 %v592, %v596
    %v598 = vmul.f32 %v593, %v596
    %v599 = vmul.f32 %v594, %v596
    %v600 = vmul.f32 %v595, %v596
    %v601 = vmul.f32 %v588, %v588
    %v602 = vmul.f32 %v589, %v589
    %v603 = vmul.f32 %v590, %v590
    %v604 = vmul.f32 %v591, %v591
    %v605 = vsub.f32 %v601, %v597
    %v606 = vsub.f32 %v602, %v598
    %v607 = vsub.f32 %v603, %v599
    %v608 = vsub.f32 %v604, %v600
    %v609 = vadd.f32 %v605, 1e-08
    %v610 = vadd.f32 %v606, 1e-08
    %v611 = vadd.f32 %v607, 1e-08
    %v612 = vadd.f32 %v608, 1e-08
    %v613 = vrsqrt.pop %v609
    %v614 = vmul.f32 %v609, %v613
    %vm615 = vcmp.eq.f32.partialorder %v609, inf
    %v616 = vsel %vm615, %v609, %v614
    %vm617 = vcmp.eq.f32.partialorder %v609, 0.0
    %v618 = vand.u32 %v609, 2147483648
    %v619 = vsel %vm617, %v618, %v616
    %v620 = vrsqrt.pop %v610
    %v621 = vmul.f32 %v610, %v620
    %vm622 = vcmp.eq.f32.partialorder %v610, inf
    %v623 = vsel %vm622, %v610, %v621
    %vm624 = vcmp.eq.f32.partialorder %v610, 0.0
    %v625 = vand.u32 %v610, 2147483648
    %v626 = vsel %vm624, %v625, %v623
    %v627 = vrsqrt.pop %v611
    %v628 = vmul.f32 %v611, %v627
    %vm629 = vcmp.eq.f32.partialorder %v611, inf
    %v630 = vsel %vm629, %v611, %v628
    %vm631 = vcmp.eq.f32.partialorder %v611, 0.0
    %v632 = vand.u32 %v611, 2147483648
    %v633 = vsel %vm631, %v632, %v630
    %v634 = vrsqrt.pop %v612
    %v635 = vmul.f32 %v612, %v634
    %vm636 = vcmp.eq.f32.partialorder %v612, inf
    %v637 = vsel %vm636, %v612, %v635
    %vm638 = vcmp.eq.f32.partialorder %v612, 0.0
    %v639 = vand.u32 %v612, 2147483648
    %v640 = vsel %vm638, %v639, %v637
    %v641 = vadd.f32 %v588, %v619
    %v642 = vadd.f32 %v589, %v626
    %v643 = vadd.f32 %v590, %v633
    %v644 = vadd.f32 %v591, %v640
    %v645 = vadd.f32 %v641, 1e-08
    %v646 = vadd.f32 %v642, 1e-08
    %v647 = vadd.f32 %v643, 1e-08
    %v648 = vadd.f32 %v644, 1e-08
    %v649 = vrsqrt.pop %v645
    %v650 = vmul.f32 %v645, %v649
    %vm651 = vcmp.eq.f32.partialorder %v645, inf
    %v652 = vsel %vm651, %v645, %v650
    %vm653 = vcmp.eq.f32.partialorder %v645, 0.0
    %v654 = vand.u32 %v645, 2147483648
    %v655 = vsel %vm653, %v654, %v652
    %v656 = vrsqrt.pop %v646
    %v657 = vmul.f32 %v646, %v656
    %vm658 = vcmp.eq.f32.partialorder %v646, inf
    %v659 = vsel %vm658, %v646, %v657
    %vm660 = vcmp.eq.f32.partialorder %v646, 0.0
    %v661 = vand.u32 %v646, 2147483648
    %v662 = vsel %vm660, %v661, %v659
    %v663 = vrsqrt.pop %v647
    %v664 = vmul.f32 %v647, %v663
    %vm665 = vcmp.eq.f32.partialorder %v647, inf
    %v666 = vsel %vm665, %v647, %v664
    %vm667 = vcmp.eq.f32.partialorder %v647, 0.0
    %v668 = vand.u32 %v647, 2147483648
    %v669 = vsel %vm667, %v668, %v666
    %v670 = vrsqrt.pop %v648
    %v671 = vmul.f32 %v648, %v670
    %vm672 = vcmp.eq.f32.partialorder %v648, inf
    %v673 = vsel %vm672, %v648, %v671
    %vm674 = vcmp.eq.f32.partialorder %v648, 0.0
    %v675 = vand.u32 %v648, 2147483648
    %v676 = vsel %vm674, %v675, %v673
    %v677 = vsub.f32 1.0, %v655
    %v678 = vsub.f32 1.0, %v662
    %v679 = vsub.f32 1.0, %v669
    %v680 = vsub.f32 1.0, %v676
    %v681 = vstv %s519
    %v682 = vmul.f32 %v681, %v677
    %v683 = vmul.f32 %v681, %v678
    %v684 = vmul.f32 %v681, %v679
    %v685 = vmul.f32 %v681, %v680
    %v686 = vmul.f32 %v682, 0.5
    %v687 = vmul.f32 %v683, 0.5
    %v688 = vmul.f32 %v684, 0.5
    %v689 = vmul.f32 %v685, 0.5
    %v690 = vtanh.pop %v686
    %v691 = vtanh.pop %v687
    %v692 = vtanh.pop %v688
    %v693 = vtanh.pop %v689
    %v694 = vmul.f32 %v690, 0.5
    %v695 = vmul.f32 %v691, 0.5
    %v696 = vmul.f32 %v692, 0.5
    %v697 = vmul.f32 %v693, 0.5
    %v698 = vadd.f32 %v694, 0.5
    %v699 = vadd.f32 %v695, 0.5
    %v700 = vadd.f32 %v696, 0.5
    %v701 = vadd.f32 %v697, 0.5
    %v702 = vsub.f32 1.0, %v698
    %v703 = vsub.f32 1.0, %v699
    %v704 = vsub.f32 1.0, %v700
    %v705 = vsub.f32 1.0, %v701
    %v706 = vstv %s527
    %v707 = vmul.f32 %v706, %v698
    %v708 = vmul.f32 %v706, %v699
    %v709 = vmul.f32 %v706, %v700
    %v710 = vmul.f32 %v706, %v701
    %v711 = vmul.f32 %v481, %v702
    %v712 = vmul.f32 %v482, %v703
    %v713 = vmul.f32 %v483, %v704
    %v714 = vmul.f32 %v484, %v705
    %v715 = vadd.f32 %v707, %v711
    %v716 = vadd.f32 %v708, %v712
    %v717 = vadd.f32 %v709, %v713
    %v718 = vadd.f32 %v710, %v714
    %v719 = vstv %s528
    %v720 = vmul.f32 %v719, %v698
    %v721 = vmul.f32 %v719, %v699
    %v722 = vmul.f32 %v719, %v700
    %v723 = vmul.f32 %v719, %v701
    %v724 = vmul.f32 %v494, %v702
    %v725 = vmul.f32 %v495, %v703
    %v726 = vmul.f32 %v496, %v704
    %v727 = vmul.f32 %v497, %v705
    %v728 = vadd.f32 %v720, %v724
    %v729 = vadd.f32 %v721, %v725
    %v730 = vadd.f32 %v722, %v726
    %v731 = vadd.f32 %v723, %v727
    %v732 = vstv %s529
    %v733 = vmul.f32 %v732, %v698
    %v734 = vmul.f32 %v732, %v699
    %v735 = vmul.f32 %v732, %v700
    %v736 = vmul.f32 %v732, %v701
    %v737 = vmul.f32 %v507, %v702
    %v738 = vmul.f32 %v508, %v703
    %v739 = vmul.f32 %v509, %v704
    %v740 = vmul.f32 %v510, %v705
    %v741 = vadd.f32 %v733, %v737
    %v742 = vadd.f32 %v734, %v738
    %v743 = vadd.f32 %v735, %v739
    %v744 = vadd.f32 %v736, %v740
    %v745 = vmul.f32 %v515, %v702
    %v746 = vmul.f32 %v516, %v703
    %v747 = vmul.f32 %v517, %v704
    %v748 = vmul.f32 %v518, %v705
    %v749 = vadd.f32 %v698, %v745
    %v750 = vadd.f32 %v699, %v746
    %v751 = vadd.f32 %v700, %v747
    %v752 = vadd.f32 %v701, %v748
    %753 = vst [vmem:[#allocation5] sm:$0xff] %v715
    %754 = vst [vmem:[#allocation5 + $0x8] sm:$0xff] %v716
    %755 = vst [vmem:[#allocation5 + $0x10] sm:$0xff] %v717
    %756 = vst [vmem:[#allocation5 + $0x18] sm:$0xff] %v718
    %s757 = scalar_lea.vmem [#allocation5], 32
    %758 = vst [vmem:[%s757] sm:$0xff] %v728
    %759 = vst [vmem:[%s757 + $0x8] sm:$0xff] %v729
    %760 = vst [vmem:[%s757 + $0x10] sm:$0xff] %v730
    %761 = vst [vmem:[%s757 + $0x18] sm:$0xff] %v731
    %s762 = scalar_lea.vmem [#allocation5], 64
    %763 = vst [vmem:[%s762] sm:$0xff] %v741
    %764 = vst [vmem:[%s762 + $0x8] sm:$0xff] %v742
    %765 = vst [vmem:[%s762 + $0x10] sm:$0xff] %v743
    %766 = vst [vmem:[%s762 + $0x18] sm:$0xff] %v744
    %s767 = scalar_lea.vmem [#allocation5], 96
    %768 = vst [vmem:[%s767] sm:$0xff] %v749
    %769 = vst [vmem:[%s767 + $0x8] sm:$0xff] %v750
    %770 = vst [vmem:[%s767 + $0x10] sm:$0xff] %v751
    %771 = vst [vmem:[%s767 + $0x18] sm:$0xff] %v752
    %s772 = sld [smem:[#allocation2 + $0x200]]
    %s773 = sld [smem:[#allocation2 + $0x201]]
    %s774 = sld [smem:[#allocation2 + $0x202]]
    %s775 = sld [smem:[#allocation2 + $0x203]]
    %s776 = sld [smem:[#allocation2 + $0x204]]
    %s777 = sld [smem:[#allocation2 + $0x205]]
    %s778 = sld [smem:[#allocation2 + $0x206]]
    %s779 = sld [smem:[#allocation2 + $0x207]]
    %s780 = sld [smem:[#allocation2 + $0x208]]
    %s781 = sld [smem:[#allocation2 + $0x209]]
    %s782 = sld [smem:[#allocation2 + $0x20a]]
    %v783 = vstv %s773
    %v784 = vsub.f32 %v51, %v783
    %v785 = vsub.f32 %v52, %v783
    %v786 = vsub.f32 %v53, %v783
    %v787 = vsub.f32 %v54, %v783
    %v788 = vstv %s774
    %v789 = vsub.f32 %v59, %v788
    %v790 = vsub.f32 %v60, %v788
    %v791 = vsub.f32 %v61, %v788
    %v792 = vsub.f32 %v62, %v788
    %v793 = vstv %s777
    %v794 = vmul.f32 %v784, %v793
    %v795 = vmul.f32 %v785, %v793
    %v796 = vmul.f32 %v786, %v793
    %v797 = vmul.f32 %v787, %v793
    %v798 = vstv %s778
    %v799 = vmul.f32 %v789, %v798
    %v800 = vmul.f32 %v790, %v798
    %v801 = vmul.f32 %v791, %v798
    %v802 = vmul.f32 %v792, %v798
    %v803 = vsub.f32 %v794, %v799
    %v804 = vsub.f32 %v795, %v800
    %v805 = vsub.f32 %v796, %v801
    %v806 = vsub.f32 %v797, %v802
    %v807 = vmul.f32 %v784, %v798
    %v808 = vmul.f32 %v785, %v798
    %v809 = vmul.f32 %v786, %v798
    %v810 = vmul.f32 %v787, %v798
    %v811 = vmul.f32 %v789, %v793
    %v812 = vmul.f32 %v790, %v793
    %v813 = vmul.f32 %v791, %v793
    %v814 = vmul.f32 %v792, %v793
    %v815 = vadd.f32 %v807, %v811
    %v816 = vadd.f32 %v808, %v812
    %v817 = vadd.f32 %v809, %v813
    %v818 = vadd.f32 %v810, %v814
    %v819 = vstv %s775
    %v820 = vmul.f32 %v803, %v819
    %v821 = vmul.f32 %v804, %v819
    %v822 = vmul.f32 %v805, %v819
    %v823 = vmul.f32 %v806, %v819
    %v824 = vstv %s776
    %v825 = vmul.f32 %v815, %v824
    %v826 = vmul.f32 %v816, %v824
    %v827 = vmul.f32 %v817, %v824
    %v828 = vmul.f32 %v818, %v824
    %v829 = vmul.f32 %v820, %v820
    %v830 = vmul.f32 %v821, %v821
    %v831 = vmul.f32 %v822, %v822
    %v832 = vmul.f32 %v823, %v823
    %v833 = vmul.f32 %v825, %v825
    %v834 = vmul.f32 %v826, %v826
    %v835 = vmul.f32 %v827, %v827
    %v836 = vmul.f32 %v828, %v828
    %v837 = vadd.f32 %v829, %v833
    %v838 = vadd.f32 %v830, %v834
    %v839 = vadd.f32 %v831, %v835
    %v840 = vadd.f32 %v832, %v836
    %v841 = vmul.f32 %v837, 0.5
    %v842 = vmul.f32 %v838, 0.5
    %v843 = vmul.f32 %v839, 0.5
    %v844 = vmul.f32 %v840, 0.5
    %v845 = vmul.f32 %v829, %v833
    %v846 = vmul.f32 %v830, %v834
    %v847 = vmul.f32 %v831, %v835
    %v848 = vmul.f32 %v832, %v836
    %v849 = vstv %s779
    %v850 = vmul.f32 %v845, %v849
    %v851 = vmul.f32 %v846, %v849
    %v852 = vmul.f32 %v847, %v849
    %v853 = vmul.f32 %v848, %v849
    %v854 = vmul.f32 %v841, %v841
    %v855 = vmul.f32 %v842, %v842
    %v856 = vmul.f32 %v843, %v843
    %v857 = vmul.f32 %v844, %v844
    %v858 = vsub.f32 %v854, %v850
    %v859 = vsub.f32 %v855, %v851
    %v860 = vsub.f32 %v856, %v852
    %v861 = vsub.f32 %v857, %v853
    %v862 = vadd.f32 %v858, 1e-08
    %v863 = vadd.f32 %v859, 1e-08
    %v864 = vadd.f32 %v860, 1e-08
    %v865 = vadd.f32 %v861, 1e-08
    %v866 = vrsqrt.pop %v862
    %v867 = vmul.f32 %v862, %v866
    %vm868 = vcmp.eq.f32.partialorder %v862, inf
    %v869 = vsel %vm868, %v862, %v867
    %vm870 = vcmp.eq.f32.partialorder %v862, 0.0
    %v871 = vand.u32 %v862, 2147483648
    %v872 = vsel %vm870, %v871, %v869
    %v873 = vrsqrt.pop %v863
    %v874 = vmul.f32 %v863, %v873
    %vm875 = vcmp.eq.f32.partialorder %v863, inf
    %v876 = vsel %vm875, %v863, %v874
    %vm877 = vcmp.eq.f32.partialorder %v863, 0.0
    %v878 = vand.u32 %v863, 2147483648
    %v879 = vsel %vm877, %v878, %v876
    %v880 = vrsqrt.pop %v864
    %v881 = vmul.f32 %v864, %v880
    %vm882 = vcmp.eq.f32.partialorder %v864, inf
    %v883 = vsel %vm882, %v864, %v881
    %vm884 = vcmp.eq.f32.partialorder %v864, 0.0
    %v885 = vand.u32 %v864, 2147483648
    %v886 = vsel %vm884, %v885, %v883
    %v887 = vrsqrt.pop %v865
    %v888 = vmul.f32 %v865, %v887
    %vm889 = vcmp.eq.f32.partialorder %v865, inf
    %v890 = vsel %vm889, %v865, %v888
    %vm891 = vcmp.eq.f32.partialorder %v865, 0.0
    %v892 = vand.u32 %v865, 2147483648
    %v893 = vsel %vm891, %v892, %v890
    %v894 = vadd.f32 %v841, %v872
    %v895 = vadd.f32 %v842, %v879
    %v896 = vadd.f32 %v843, %v886
    %v897 = vadd.f32 %v844, %v893
    %v898 = vadd.f32 %v894, 1e-08
    %v899 = vadd.f32 %v895, 1e-08
    %v900 = vadd.f32 %v896, 1e-08
    %v901 = vadd.f32 %v897, 1e-08
    %v902 = vrsqrt.pop %v898
    %v903 = vmul.f32 %v898, %v902
    %vm904 = vcmp.eq.f32.partialorder %v898, inf
    %v905 = vsel %vm904, %v898, %v903
    %vm906 = vcmp.eq.f32.partialorder %v898, 0.0
    %v907 = vand.u32 %v898, 2147483648
    %v908 = vsel %vm906, %v907, %v905
    %v909 = vrsqrt.pop %v899
    %v910 = vmul.f32 %v899, %v909
    %vm911 = vcmp.eq.f32.partialorder %v899, inf
    %v912 = vsel %vm911, %v899, %v910
    %vm913 = vcmp.eq.f32.partialorder %v899, 0.0
    %v914 = vand.u32 %v899, 2147483648
    %v915 = vsel %vm913, %v914, %v912
    %v916 = vrsqrt.pop %v900
    %v917 = vmul.f32 %v900, %v916
    %vm918 = vcmp.eq.f32.partialorder %v900, inf
    %v919 = vsel %vm918, %v900, %v917
    %vm920 = vcmp.eq.f32.partialorder %v900, 0.0
    %v921 = vand.u32 %v900, 2147483648
    %v922 = vsel %vm920, %v921, %v919
    %v923 = vrsqrt.pop %v901
    %v924 = vmul.f32 %v901, %v923
    %vm925 = vcmp.eq.f32.partialorder %v901, inf
    %v926 = vsel %vm925, %v901, %v924
    %vm927 = vcmp.eq.f32.partialorder %v901, 0.0
    %v928 = vand.u32 %v901, 2147483648
    %v929 = vsel %vm927, %v928, %v926
    %v930 = vsub.f32 1.0, %v908
    %v931 = vsub.f32 1.0, %v915
    %v932 = vsub.f32 1.0, %v922
    %v933 = vsub.f32 1.0, %v929
    %v934 = vstv %s772
    %v935 = vmul.f32 %v934, %v930
    %v936 = vmul.f32 %v934, %v931
    %v937 = vmul.f32 %v934, %v932
    %v938 = vmul.f32 %v934, %v933
    %v939 = vmul.f32 %v935, 0.5
    %v940 = vmul.f32 %v936, 0.5
    %v941 = vmul.f32 %v937, 0.5
    %v942 = vmul.f32 %v938, 0.5
    %v943 = vtanh.pop %v939
    %v944 = vtanh.pop %v940
    %v945 = vtanh.pop %v941
    %v946 = vtanh.pop %v942
    %v947 = vmul.f32 %v943, 0.5
    %v948 = vmul.f32 %v944, 0.5
    %v949 = vmul.f32 %v945, 0.5
    %v950 = vmul.f32 %v946, 0.5
    %v951 = vadd.f32 %v947, 0.5
    %v952 = vadd.f32 %v948, 0.5
    %v953 = vadd.f32 %v949, 0.5
    %v954 = vadd.f32 %v950, 0.5
    %v955 = vsub.f32 1.0, %v951
    %v956 = vsub.f32 1.0, %v952
    %v957 = vsub.f32 1.0, %v953
    %v958 = vsub.f32 1.0, %v954
    %v959 = vstv %s780
    %v960 = vmul.f32 %v959, %v951
    %v961 = vmul.f32 %v959, %v952
    %v962 = vmul.f32 %v959, %v953
    %v963 = vmul.f32 %v959, %v954
    %v964 = vmul.f32 %v955, 0.0
    %v965 = vmul.f32 %v956, 0.0
    %v966 = vmul.f32 %v957, 0.0
    %v967 = vmul.f32 %v958, 0.0
    %v968 = vadd.f32 %v960, %v964
    %v969 = vadd.f32 %v961, %v965
    %v970 = vadd.f32 %v962, %v966
    %v971 = vadd.f32 %v963, %v967
    %v972 = vstv %s781
    %v973 = vmul.f32 %v972, %v951
    %v974 = vmul.f32 %v972, %v952
    %v975 = vmul.f32 %v972, %v953
    %v976 = vmul.f32 %v972, %v954
    %v977 = vadd.f32 %v973, %v964
    %v978 = vadd.f32 %v974, %v965
    %v979 = vadd.f32 %v975, %v966
    %v980 = vadd.f32 %v976, %v967
    %v981 = vstv %s782
    %v982 = vmul.f32 %v981, %v951
    %v983 = vmul.f32 %v981, %v952
    %v984 = vmul.f32 %v981, %v953
    %v985 = vmul.f32 %v981, %v954
    %v986 = vadd.f32 %v982, %v964
    %v987 = vadd.f32 %v983, %v965
    %v988 = vadd.f32 %v984, %v966
    %v989 = vadd.f32 %v985, %v967
    %v990 = vadd.f32 %v951, %v964
    %v991 = vadd.f32 %v952, %v965
    %v992 = vadd.f32 %v953, %v966
    %v993 = vadd.f32 %v954, %v967
    %s994 = sld [smem:[#allocation2 + $0x280]]
    %s995 = sld [smem:[#allocation2 + $0x281]]
    %s996 = sld [smem:[#allocation2 + $0x282]]
    %s997 = sld [smem:[#allocation2 + $0x283]]
    %s998 = sld [smem:[#allocation2 + $0x284]]
    %s999 = sld [smem:[#allocation2 + $0x285]]
    %s1000 = sld [smem:[#allocation2 + $0x286]]
    %s1001 = sld [smem:[#allocation2 + $0x287]]
    %s1002 = sld [smem:[#allocation2 + $0x288]]
    %s1003 = sld [smem:[#allocation2 + $0x289]]
    %s1004 = sld [smem:[#allocation2 + $0x28a]]
    %v1005 = vstv %s995
    %v1006 = vsub.f32 %v51, %v1005
    %v1007 = vsub.f32 %v52, %v1005
    %v1008 = vsub.f32 %v53, %v1005
    %v1009 = vsub.f32 %v54, %v1005
    %v1010 = vstv %s996
    %v1011 = vsub.f32 %v59, %v1010
    %v1012 = vsub.f32 %v60, %v1010
    %v1013 = vsub.f32 %v61, %v1010
    %v1014 = vsub.f32 %v62, %v1010
    %v1015 = vstv %s999
    %v1016 = vmul.f32 %v1006, %v1015
    %v1017 = vmul.f32 %v1007, %v1015
    %v1018 = vmul.f32 %v1008, %v1015
    %v1019 = vmul.f32 %v1009, %v1015
    %v1020 = vstv %s1000
    %v1021 = vmul.f32 %v1011, %v1020
    %v1022 = vmul.f32 %v1012, %v1020
    %v1023 = vmul.f32 %v1013, %v1020
    %v1024 = vmul.f32 %v1014, %v1020
    %v1025 = vsub.f32 %v1016, %v1021
    %v1026 = vsub.f32 %v1017, %v1022
    %v1027 = vsub.f32 %v1018, %v1023
    %v1028 = vsub.f32 %v1019, %v1024
    %v1029 = vmul.f32 %v1006, %v1020
    %v1030 = vmul.f32 %v1007, %v1020
    %v1031 = vmul.f32 %v1008, %v1020
    %v1032 = vmul.f32 %v1009, %v1020
    %v1033 = vmul.f32 %v1011, %v1015
    %v1034 = vmul.f32 %v1012, %v1015
    %v1035 = vmul.f32 %v1013, %v1015
    %v1036 = vmul.f32 %v1014, %v1015
    %v1037 = vadd.f32 %v1029, %v1033
    %v1038 = vadd.f32 %v1030, %v1034
    %v1039 = vadd.f32 %v1031, %v1035
    %v1040 = vadd.f32 %v1032, %v1036
    %v1041 = vstv %s997
    %v1042 = vmul.f32 %v1025, %v1041
    %v1043 = vmul.f32 %v1026, %v1041
    %v1044 = vmul.f32 %v1027, %v1041
    %v1045 = vmul.f32 %v1028, %v1041
    %v1046 = vstv %s998
    %v1047 = vmul.f32 %v1037, %v1046
    %v1048 = vmul.f32 %v1038, %v1046
    %v1049 = vmul.f32 %v1039, %v1046
    %v1050 = vmul.f32 %v1040, %v1046
    %v1051 = vmul.f32 %v1042, %v1042
    %v1052 = vmul.f32 %v1043, %v1043
    %v1053 = vmul.f32 %v1044, %v1044
    %v1054 = vmul.f32 %v1045, %v1045
    %v1055 = vmul.f32 %v1047, %v1047
    %v1056 = vmul.f32 %v1048, %v1048
    %v1057 = vmul.f32 %v1049, %v1049
    %v1058 = vmul.f32 %v1050, %v1050
    %v1059 = vadd.f32 %v1051, %v1055
    %v1060 = vadd.f32 %v1052, %v1056
    %v1061 = vadd.f32 %v1053, %v1057
    %v1062 = vadd.f32 %v1054, %v1058
    %v1063 = vmul.f32 %v1059, 0.5
    %v1064 = vmul.f32 %v1060, 0.5
    %v1065 = vmul.f32 %v1061, 0.5
    %v1066 = vmul.f32 %v1062, 0.5
    %v1067 = vmul.f32 %v1051, %v1055
    %v1068 = vmul.f32 %v1052, %v1056
    %v1069 = vmul.f32 %v1053, %v1057
    %v1070 = vmul.f32 %v1054, %v1058
    %v1071 = vstv %s1001
    %v1072 = vmul.f32 %v1067, %v1071
    %v1073 = vmul.f32 %v1068, %v1071
    %v1074 = vmul.f32 %v1069, %v1071
    %v1075 = vmul.f32 %v1070, %v1071
    %v1076 = vmul.f32 %v1063, %v1063
    %v1077 = vmul.f32 %v1064, %v1064
    %v1078 = vmul.f32 %v1065, %v1065
    %v1079 = vmul.f32 %v1066, %v1066
    %v1080 = vsub.f32 %v1076, %v1072
    %v1081 = vsub.f32 %v1077, %v1073
    %v1082 = vsub.f32 %v1078, %v1074
    %v1083 = vsub.f32 %v1079, %v1075
    %v1084 = vadd.f32 %v1080, 1e-08
    %v1085 = vadd.f32 %v1081, 1e-08
    %v1086 = vadd.f32 %v1082, 1e-08
    %v1087 = vadd.f32 %v1083, 1e-08
    %v1088 = vrsqrt.pop %v1084
    %v1089 = vmul.f32 %v1084, %v1088
    %vm1090 = vcmp.eq.f32.partialorder %v1084, inf
    %v1091 = vsel %vm1090, %v1084, %v1089
    %vm1092 = vcmp.eq.f32.partialorder %v1084, 0.0
    %v1093 = vand.u32 %v1084, 2147483648
    %v1094 = vsel %vm1092, %v1093, %v1091
    %v1095 = vrsqrt.pop %v1085
    %v1096 = vmul.f32 %v1085, %v1095
    %vm1097 = vcmp.eq.f32.partialorder %v1085, inf
    %v1098 = vsel %vm1097, %v1085, %v1096
    %vm1099 = vcmp.eq.f32.partialorder %v1085, 0.0
    %v1100 = vand.u32 %v1085, 2147483648
    %v1101 = vsel %vm1099, %v1100, %v1098
    %v1102 = vrsqrt.pop %v1086
    %v1103 = vmul.f32 %v1086, %v1102
    %vm1104 = vcmp.eq.f32.partialorder %v1086, inf
    %v1105 = vsel %vm1104, %v1086, %v1103
    %vm1106 = vcmp.eq.f32.partialorder %v1086, 0.0
    %v1107 = vand.u32 %v1086, 2147483648
    %v1108 = vsel %vm1106, %v1107, %v1105
    %v1109 = vrsqrt.pop %v1087
    %v1110 = vmul.f32 %v1087, %v1109
    %vm1111 = vcmp.eq.f32.partialorder %v1087, inf
    %v1112 = vsel %vm1111, %v1087, %v1110
    %vm1113 = vcmp.eq.f32.partialorder %v1087, 0.0
    %v1114 = vand.u32 %v1087, 2147483648
    %v1115 = vsel %vm1113, %v1114, %v1112
    %v1116 = vadd.f32 %v1063, %v1094
    %v1117 = vadd.f32 %v1064, %v1101
    %v1118 = vadd.f32 %v1065, %v1108
    %v1119 = vadd.f32 %v1066, %v1115
    %v1120 = vadd.f32 %v1116, 1e-08
    %v1121 = vadd.f32 %v1117, 1e-08
    %v1122 = vadd.f32 %v1118, 1e-08
    %v1123 = vadd.f32 %v1119, 1e-08
    %v1124 = vrsqrt.pop %v1120
    %v1125 = vmul.f32 %v1120, %v1124
    %vm1126 = vcmp.eq.f32.partialorder %v1120, inf
    %v1127 = vsel %vm1126, %v1120, %v1125
    %vm1128 = vcmp.eq.f32.partialorder %v1120, 0.0
    %v1129 = vand.u32 %v1120, 2147483648
    %v1130 = vsel %vm1128, %v1129, %v1127
    %v1131 = vrsqrt.pop %v1121
    %v1132 = vmul.f32 %v1121, %v1131
    %vm1133 = vcmp.eq.f32.partialorder %v1121, inf
    %v1134 = vsel %vm1133, %v1121, %v1132
    %vm1135 = vcmp.eq.f32.partialorder %v1121, 0.0
    %v1136 = vand.u32 %v1121, 2147483648
    %v1137 = vsel %vm1135, %v1136, %v1134
    %v1138 = vrsqrt.pop %v1122
    %v1139 = vmul.f32 %v1122, %v1138
    %vm1140 = vcmp.eq.f32.partialorder %v1122, inf
    %v1141 = vsel %vm1140, %v1122, %v1139
    %vm1142 = vcmp.eq.f32.partialorder %v1122, 0.0
    %v1143 = vand.u32 %v1122, 2147483648
    %v1144 = vsel %vm1142, %v1143, %v1141
    %v1145 = vrsqrt.pop %v1123
    %v1146 = vmul.f32 %v1123, %v1145
    %vm1147 = vcmp.eq.f32.partialorder %v1123, inf
    %v1148 = vsel %vm1147, %v1123, %v1146
    %vm1149 = vcmp.eq.f32.partialorder %v1123, 0.0
    %v1150 = vand.u32 %v1123, 2147483648
    %v1151 = vsel %vm1149, %v1150, %v1148
    %v1152 = vsub.f32 1.0, %v1130
    %v1153 = vsub.f32 1.0, %v1137
    %v1154 = vsub.f32 1.0, %v1144
    %v1155 = vsub.f32 1.0, %v1151
    %v1156 = vstv %s994
    %v1157 = vmul.f32 %v1156, %v1152
    %v1158 = vmul.f32 %v1156, %v1153
    %v1159 = vmul.f32 %v1156, %v1154
    %v1160 = vmul.f32 %v1156, %v1155
    %v1161 = vmul.f32 %v1157, 0.5
    %v1162 = vmul.f32 %v1158, 0.5
    %v1163 = vmul.f32 %v1159, 0.5
    %v1164 = vmul.f32 %v1160, 0.5
    %v1165 = vtanh.pop %v1161
    %v1166 = vtanh.pop %v1162
    %v1167 = vtanh.pop %v1163
    %v1168 = vtanh.pop %v1164
    %v1169 = vmul.f32 %v1165, 0.5
    %v1170 = vmul.f32 %v1166, 0.5
    %v1171 = vmul.f32 %v1167, 0.5
    %v1172 = vmul.f32 %v1168, 0.5
    %v1173 = vadd.f32 %v1169, 0.5
    %v1174 = vadd.f32 %v1170, 0.5
    %v1175 = vadd.f32 %v1171, 0.5
    %v1176 = vadd.f32 %v1172, 0.5
    %v1177 = vsub.f32 1.0, %v1173
    %v1178 = vsub.f32 1.0, %v1174
    %v1179 = vsub.f32 1.0, %v1175
    %v1180 = vsub.f32 1.0, %v1176
    %v1181 = vstv %s1002
    %v1182 = vmul.f32 %v1181, %v1173
    %v1183 = vmul.f32 %v1181, %v1174
    %v1184 = vmul.f32 %v1181, %v1175
    %v1185 = vmul.f32 %v1181, %v1176
    %v1186 = vmul.f32 %v968, %v1177
    %v1187 = vmul.f32 %v969, %v1178
    %v1188 = vmul.f32 %v970, %v1179
    %v1189 = vmul.f32 %v971, %v1180
    %v1190 = vadd.f32 %v1182, %v1186
    %v1191 = vadd.f32 %v1183, %v1187
    %v1192 = vadd.f32 %v1184, %v1188
    %v1193 = vadd.f32 %v1185, %v1189
    %v1194 = vstv %s1003
    %v1195 = vmul.f32 %v1194, %v1173
    %v1196 = vmul.f32 %v1194, %v1174
    %v1197 = vmul.f32 %v1194, %v1175
    %v1198 = vmul.f32 %v1194, %v1176
    %v1199 = vmul.f32 %v977, %v1177
    %v1200 = vmul.f32 %v978, %v1178
    %v1201 = vmul.f32 %v979, %v1179
    %v1202 = vmul.f32 %v980, %v1180
    %v1203 = vadd.f32 %v1195, %v1199
    %v1204 = vadd.f32 %v1196, %v1200
    %v1205 = vadd.f32 %v1197, %v1201
    %v1206 = vadd.f32 %v1198, %v1202
    %v1207 = vstv %s1004
    %v1208 = vmul.f32 %v1207, %v1173
    %v1209 = vmul.f32 %v1207, %v1174
    %v1210 = vmul.f32 %v1207, %v1175
    %v1211 = vmul.f32 %v1207, %v1176
    %v1212 = vmul.f32 %v986, %v1177
    %v1213 = vmul.f32 %v987, %v1178
    %v1214 = vmul.f32 %v988, %v1179
    %v1215 = vmul.f32 %v989, %v1180
    %v1216 = vadd.f32 %v1208, %v1212
    %v1217 = vadd.f32 %v1209, %v1213
    %v1218 = vadd.f32 %v1210, %v1214
    %v1219 = vadd.f32 %v1211, %v1215
    %v1220 = vmul.f32 %v990, %v1177
    %v1221 = vmul.f32 %v991, %v1178
    %v1222 = vmul.f32 %v992, %v1179
    %v1223 = vmul.f32 %v993, %v1180
    %v1224 = vadd.f32 %v1173, %v1220
    %v1225 = vadd.f32 %v1174, %v1221
    %v1226 = vadd.f32 %v1175, %v1222
    %v1227 = vadd.f32 %v1176, %v1223
    %s1228 = sld [smem:[#allocation2 + $0x300]]
    %s1229 = sld [smem:[#allocation2 + $0x301]]
    %s1230 = sld [smem:[#allocation2 + $0x302]]
    %s1231 = sld [smem:[#allocation2 + $0x303]]
    %s1232 = sld [smem:[#allocation2 + $0x304]]
    %s1233 = sld [smem:[#allocation2 + $0x305]]
    %s1234 = sld [smem:[#allocation2 + $0x306]]
    %s1235 = sld [smem:[#allocation2 + $0x307]]
    %s1236 = sld [smem:[#allocation2 + $0x308]]
    %s1237 = sld [smem:[#allocation2 + $0x309]]
    %s1238 = sld [smem:[#allocation2 + $0x30a]]
    %v1239 = vstv %s1229
    %v1240 = vsub.f32 %v51, %v1239
    %v1241 = vsub.f32 %v52, %v1239
    %v1242 = vsub.f32 %v53, %v1239
    %v1243 = vsub.f32 %v54, %v1239
    %v1244 = vstv %s1230
    %v1245 = vsub.f32 %v59, %v1244
    %v1246 = vsub.f32 %v60, %v1244
    %v1247 = vsub.f32 %v61, %v1244
    %v1248 = vsub.f32 %v62, %v1244
    %v1249 = vstv %s1233
    %v1250 = vmul.f32 %v1240, %v1249
    %v1251 = vmul.f32 %v1241, %v1249
    %v1252 = vmul.f32 %v1242, %v1249
    %v1253 = vmul.f32 %v1243, %v1249
    %v1254 = vstv %s1234
    %v1255 = vmul.f32 %v1245, %v1254
    %v1256 = vmul.f32 %v1246, %v1254
    %v1257 = vmul.f32 %v1247, %v1254
    %v1258 = vmul.f32 %v1248, %v1254
    %v1259 = vsub.f32 %v1250, %v1255
    %v1260 = vsub.f32 %v1251, %v1256
    %v1261 = vsub.f32 %v1252, %v1257
    %v1262 = vsub.f32 %v1253, %v1258
    %v1263 = vmul.f32 %v1240, %v1254
    %v1264 = vmul.f32 %v1241, %v1254
    %v1265 = vmul.f32 %v1242, %v1254
    %v1266 = vmul.f32 %v1243, %v1254
    %v1267 = vmul.f32 %v1245, %v1249
    %v1268 = vmul.f32 %v1246, %v1249
    %v1269 = vmul.f32 %v1247, %v1249
    %v1270 = vmul.f32 %v1248, %v1249
    %v1271 = vadd.f32 %v1263, %v1267
    %v1272 = vadd.f32 %v1264, %v1268
    %v1273 = vadd.f32 %v1265, %v1269
    %v1274 = vadd.f32 %v1266, %v1270
    %v1275 = vstv %s1231
    %v1276 = vmul.f32 %v1259, %v1275
    %v1277 = vmul.f32 %v1260, %v1275
    %v1278 = vmul.f32 %v1261, %v1275
    %v1279 = vmul.f32 %v1262, %v1275
    %v1280 = vstv %s1232
    %v1281 = vmul.f32 %v1271, %v1280
    %v1282 = vmul.f32 %v1272, %v1280
    %v1283 = vmul.f32 %v1273, %v1280
    %v1284 = vmul.f32 %v1274, %v1280
    %v1285 = vmul.f32 %v1276, %v1276
    %v1286 = vmul.f32 %v1277, %v1277
    %v1287 = vmul.f32 %v1278, %v1278
    %v1288 = vmul.f32 %v1279, %v1279
    %v1289 = vmul.f32 %v1281, %v1281
    %v1290 = vmul.f32 %v1282, %v1282
    %v1291 = vmul.f32 %v1283, %v1283
    %v1292 = vmul.f32 %v1284, %v1284
    %v1293 = vadd.f32 %v1285, %v1289
    %v1294 = vadd.f32 %v1286, %v1290
    %v1295 = vadd.f32 %v1287, %v1291
    %v1296 = vadd.f32 %v1288, %v1292
    %v1297 = vmul.f32 %v1293, 0.5
    %v1298 = vmul.f32 %v1294, 0.5
    %v1299 = vmul.f32 %v1295, 0.5
    %v1300 = vmul.f32 %v1296, 0.5
    %v1301 = vmul.f32 %v1285, %v1289
    %v1302 = vmul.f32 %v1286, %v1290
    %v1303 = vmul.f32 %v1287, %v1291
    %v1304 = vmul.f32 %v1288, %v1292
    %v1305 = vstv %s1235
    %v1306 = vmul.f32 %v1301, %v1305
    %v1307 = vmul.f32 %v1302, %v1305
    %v1308 = vmul.f32 %v1303, %v1305
    %v1309 = vmul.f32 %v1304, %v1305
    %v1310 = vmul.f32 %v1297, %v1297
    %v1311 = vmul.f32 %v1298, %v1298
    %v1312 = vmul.f32 %v1299, %v1299
    %v1313 = vmul.f32 %v1300, %v1300
    %v1314 = vsub.f32 %v1310, %v1306
    %v1315 = vsub.f32 %v1311, %v1307
    %v1316 = vsub.f32 %v1312, %v1308
    %v1317 = vsub.f32 %v1313, %v1309
    %v1318 = vadd.f32 %v1314, 1e-08
    %v1319 = vadd.f32 %v1315, 1e-08
    %v1320 = vadd.f32 %v1316, 1e-08
    %v1321 = vadd.f32 %v1317, 1e-08
    %v1322 = vrsqrt.pop %v1318
    %v1323 = vmul.f32 %v1318, %v1322
    %vm1324 = vcmp.eq.f32.partialorder %v1318, inf
    %v1325 = vsel %vm1324, %v1318, %v1323
    %vm1326 = vcmp.eq.f32.partialorder %v1318, 0.0
    %v1327 = vand.u32 %v1318, 2147483648
    %v1328 = vsel %vm1326, %v1327, %v1325
    %v1329 = vrsqrt.pop %v1319
    %v1330 = vmul.f32 %v1319, %v1329
    %vm1331 = vcmp.eq.f32.partialorder %v1319, inf
    %v1332 = vsel %vm1331, %v1319, %v1330
    %vm1333 = vcmp.eq.f32.partialorder %v1319, 0.0
    %v1334 = vand.u32 %v1319, 2147483648
    %v1335 = vsel %vm1333, %v1334, %v1332
    %v1336 = vrsqrt.pop %v1320
    %v1337 = vmul.f32 %v1320, %v1336
    %vm1338 = vcmp.eq.f32.partialorder %v1320, inf
    %v1339 = vsel %vm1338, %v1320, %v1337
    %vm1340 = vcmp.eq.f32.partialorder %v1320, 0.0
    %v1341 = vand.u32 %v1320, 2147483648
    %v1342 = vsel %vm1340, %v1341, %v1339
    %v1343 = vrsqrt.pop %v1321
    %v1344 = vmul.f32 %v1321, %v1343
    %vm1345 = vcmp.eq.f32.partialorder %v1321, inf
    %v1346 = vsel %vm1345, %v1321, %v1344
    %vm1347 = vcmp.eq.f32.partialorder %v1321, 0.0
    %v1348 = vand.u32 %v1321, 2147483648
    %v1349 = vsel %vm1347, %v1348, %v1346
    %v1350 = vadd.f32 %v1297, %v1328
    %v1351 = vadd.f32 %v1298, %v1335
    %v1352 = vadd.f32 %v1299, %v1342
    %v1353 = vadd.f32 %v1300, %v1349
    %v1354 = vadd.f32 %v1350, 1e-08
    %v1355 = vadd.f32 %v1351, 1e-08
    %v1356 = vadd.f32 %v1352, 1e-08
    %v1357 = vadd.f32 %v1353, 1e-08
    %v1358 = vrsqrt.pop %v1354
    %v1359 = vmul.f32 %v1354, %v1358
    %vm1360 = vcmp.eq.f32.partialorder %v1354, inf
    %v1361 = vsel %vm1360, %v1354, %v1359
    %vm1362 = vcmp.eq.f32.partialorder %v1354, 0.0
    %v1363 = vand.u32 %v1354, 2147483648
    %v1364 = vsel %vm1362, %v1363, %v1361
    %v1365 = vrsqrt.pop %v1355
    %v1366 = vmul.f32 %v1355, %v1365
    %vm1367 = vcmp.eq.f32.partialorder %v1355, inf
    %v1368 = vsel %vm1367, %v1355, %v1366
    %vm1369 = vcmp.eq.f32.partialorder %v1355, 0.0
    %v1370 = vand.u32 %v1355, 2147483648
    %v1371 = vsel %vm1369, %v1370, %v1368
    %v1372 = vrsqrt.pop %v1356
    %v1373 = vmul.f32 %v1356, %v1372
    %vm1374 = vcmp.eq.f32.partialorder %v1356, inf
    %v1375 = vsel %vm1374, %v1356, %v1373
    %vm1376 = vcmp.eq.f32.partialorder %v1356, 0.0
    %v1377 = vand.u32 %v1356, 2147483648
    %v1378 = vsel %vm1376, %v1377, %v1375
    %v1379 = vrsqrt.pop %v1357
    %v1380 = vmul.f32 %v1357, %v1379
    %vm1381 = vcmp.eq.f32.partialorder %v1357, inf
    %v1382 = vsel %vm1381, %v1357, %v1380
    %vm1383 = vcmp.eq.f32.partialorder %v1357, 0.0
    %v1384 = vand.u32 %v1357, 2147483648
    %v1385 = vsel %vm1383, %v1384, %v1382
    %v1386 = vsub.f32 1.0, %v1364
    %v1387 = vsub.f32 1.0, %v1371
    %v1388 = vsub.f32 1.0, %v1378
    %v1389 = vsub.f32 1.0, %v1385
    %v1390 = vstv %s1228
    %v1391 = vmul.f32 %v1390, %v1386
    %v1392 = vmul.f32 %v1390, %v1387
    %v1393 = vmul.f32 %v1390, %v1388
    %v1394 = vmul.f32 %v1390, %v1389
    %v1395 = vmul.f32 %v1391, 0.5
    %v1396 = vmul.f32 %v1392, 0.5
    %v1397 = vmul.f32 %v1393, 0.5
    %v1398 = vmul.f32 %v1394, 0.5
    %v1399 = vtanh.pop %v1395
    %v1400 = vtanh.pop %v1396
    %v1401 = vtanh.pop %v1397
    %v1402 = vtanh.pop %v1398
    %v1403 = vmul.f32 %v1399, 0.5
    %v1404 = vmul.f32 %v1400, 0.5
    %v1405 = vmul.f32 %v1401, 0.5
    %v1406 = vmul.f32 %v1402, 0.5
    %v1407 = vadd.f32 %v1403, 0.5
    %v1408 = vadd.f32 %v1404, 0.5
    %v1409 = vadd.f32 %v1405, 0.5
    %v1410 = vadd.f32 %v1406, 0.5
    %v1411 = vsub.f32 1.0, %v1407
    %v1412 = vsub.f32 1.0, %v1408
    %v1413 = vsub.f32 1.0, %v1409
    %v1414 = vsub.f32 1.0, %v1410
    %v1415 = vstv %s1236
    %v1416 = vmul.f32 %v1415, %v1407
    %v1417 = vmul.f32 %v1415, %v1408
    %v1418 = vmul.f32 %v1415, %v1409
    %v1419 = vmul.f32 %v1415, %v1410
    %v1420 = vmul.f32 %v1190, %v1411
    %v1421 = vmul.f32 %v1191, %v1412
    %v1422 = vmul.f32 %v1192, %v1413
    %v1423 = vmul.f32 %v1193, %v1414
    %v1424 = vadd.f32 %v1416, %v1420
    %v1425 = vadd.f32 %v1417, %v1421
    %v1426 = vadd.f32 %v1418, %v1422
    %v1427 = vadd.f32 %v1419, %v1423
    %v1428 = vstv %s1237
    %v1429 = vmul.f32 %v1428, %v1407
    %v1430 = vmul.f32 %v1428, %v1408
    %v1431 = vmul.f32 %v1428, %v1409
    %v1432 = vmul.f32 %v1428, %v1410
    %v1433 = vmul.f32 %v1203, %v1411
    %v1434 = vmul.f32 %v1204, %v1412
    %v1435 = vmul.f32 %v1205, %v1413
    %v1436 = vmul.f32 %v1206, %v1414
    %v1437 = vadd.f32 %v1429, %v1433
    %v1438 = vadd.f32 %v1430, %v1434
    %v1439 = vadd.f32 %v1431, %v1435
    %v1440 = vadd.f32 %v1432, %v1436
    %v1441 = vstv %s1238
    %v1442 = vmul.f32 %v1441, %v1407
    %v1443 = vmul.f32 %v1441, %v1408
    %v1444 = vmul.f32 %v1441, %v1409
    %v1445 = vmul.f32 %v1441, %v1410
    %v1446 = vmul.f32 %v1216, %v1411
    %v1447 = vmul.f32 %v1217, %v1412
    %v1448 = vmul.f32 %v1218, %v1413
    %v1449 = vmul.f32 %v1219, %v1414
    %v1450 = vadd.f32 %v1442, %v1446
    %v1451 = vadd.f32 %v1443, %v1447
    %v1452 = vadd.f32 %v1444, %v1448
    %v1453 = vadd.f32 %v1445, %v1449
    %v1454 = vmul.f32 %v1224, %v1411
    %v1455 = vmul.f32 %v1225, %v1412
    %v1456 = vmul.f32 %v1226, %v1413
    %v1457 = vmul.f32 %v1227, %v1414
    %v1458 = vadd.f32 %v1407, %v1454
    %v1459 = vadd.f32 %v1408, %v1455
    %v1460 = vadd.f32 %v1409, %v1456
    %v1461 = vadd.f32 %v1410, %v1457
    %s1462 = scalar_lea.vmem [#allocation5], 128
    %1463 = vst [vmem:[%s1462] sm:$0xff] %v1424
    %1464 = vst [vmem:[%s1462 + $0x8] sm:$0xff] %v1425
    %1465 = vst [vmem:[%s1462 + $0x10] sm:$0xff] %v1426
    %1466 = vst [vmem:[%s1462 + $0x18] sm:$0xff] %v1427
    %s1467 = scalar_lea.vmem [#allocation5], 160
    %1468 = vst [vmem:[%s1467] sm:$0xff] %v1437
    %1469 = vst [vmem:[%s1467 + $0x8] sm:$0xff] %v1438
    %1470 = vst [vmem:[%s1467 + $0x10] sm:$0xff] %v1439
    %1471 = vst [vmem:[%s1467 + $0x18] sm:$0xff] %v1440
    %s1472 = scalar_lea.vmem [#allocation5], 192
    %1473 = vst [vmem:[%s1472] sm:$0xff] %v1450
    %1474 = vst [vmem:[%s1472 + $0x8] sm:$0xff] %v1451
    %1475 = vst [vmem:[%s1472 + $0x10] sm:$0xff] %v1452
    %1476 = vst [vmem:[%s1472 + $0x18] sm:$0xff] %v1453
    %s1477 = scalar_lea.vmem [#allocation5], 224
    %1478 = vst [vmem:[%s1477] sm:$0xff] %v1458
    %1479 = vst [vmem:[%s1477 + $0x8] sm:$0xff] %v1459
    %1480 = vst [vmem:[%s1477 + $0x10] sm:$0xff] %v1460
    %1481 = vst [vmem:[%s1477 + $0x18] sm:$0xff] %v1461
    // Predicated region
    $region10: #{tpu_custom_call.1} parent=1 // pred_check
      _
    $region11: #{tpu_custom_call.1} parent=1 // pred_check_branch
      %1483 = sbr.rel (0) target = $region13
    $region12: #{tpu_custom_call.1} parent=1 // pred_region
      %s1485 = ssub.s32 4096, 4096
      %1486 = vsyncadd [#allocation3], %s1485
      %s1487 = sshll.u32 [#allocation5], 4
      %s1488 = int_to_ptr.vmem [resolvable:$true] %s1487
      %1493 = dma.vmem_to_hbm [thread:$0]  %s1488, 4096, %s1, [#allocation3], 128, 128, 8
    $region13: #{tpu_custom_call.1} parent=1 // pred_fallthru
      _
    // Predicated region
    $region14: #{tpu_custom_call.1} parent=1 // pred_check
      _
    $region15: #{tpu_custom_call.1} parent=1 // pred_check_branch
      %1495 = sbr.rel (0) target = $region17
    $region16: #{tpu_custom_call.1} parent=1 // pred_region
      %1496 = dma.done [#allocation3], 4096
    $region17: #{tpu_custom_call.1} parent=1 // pred_fallthru
      _
    %1497 = vsyncpa [#allocation3], 1
    %1498 = vsyncpa [#allocation4], 1

</llo_original>
